<compile_context>
chip_gen: v7x
topology: tpu7x:2x2x1
jax: 0.10.0
libtpu: 0.0.40
codegen_flags: <defaults>
</compile_context>

<pallas_src>
import jax
import jax.numpy as jnp
import numpy as np
from jax.experimental import pallas as pl
from jax.experimental.pallas import tpu as pltpu


# ----------------------------------------------------------------------------
# Grouping helpers (plain JAX glue: data-dependent index selection / gather)
# ----------------------------------------------------------------------------
def fps(xyz, k):
    """Farthest point sampling (deterministic start at index 0).
    xyz: (B, N, 3) -> (B, k, 3)"""
    def one(pts):
        n = pts.shape[0]

        def body(i, state):
            dists, idxs = state
            last_pt = pts[idxs[i - 1]]
            d = jnp.sum((pts - last_pt) ** 2, axis=-1)
            dists = jnp.minimum(dists, d)
            idxs = idxs.at[i].set(jnp.argmax(dists).astype(jnp.int32))
            return dists, idxs

        dists0 = jnp.full((n,), jnp.inf, jnp.float32)
        idxs0 = jnp.zeros((k,), jnp.int32)
        _, idxs = jax.lax.fori_loop(1, k, body, (dists0, idxs0))
        return pts[idxs]

    return jax.vmap(one)(xyz)


def square_distance(src, dst):
    """src (B,N,C), dst (B,M,C) -> squared euclid dist (B,N,M)"""
    d = -2.0 * jnp.einsum("bnc,bmc->bnm", src, dst)
    d = d + jnp.sum(src ** 2, -1)[:, :, None]
    d = d + jnp.sum(dst ** 2, -1)[:, None, :]
    return d


def knn_gather(xyz, center, group_size):
    """kNN indices (torch.topk largest=False) + gather.
    xyz (B,N,3), center (B,G,3) -> (B,G,M,3)"""
    sqd = square_distance(center, xyz)               # (B, G, N)
    _, idx = jax.lax.top_k(-sqd, group_size)         # (B, G, M)
    grouped = jax.vmap(lambda p, i: p[i])(xyz, idx)  # (B, G, M, 3)
    return grouped


# ----------------------------------------------------------------------------
# Pallas encoder kernel (MiniPointNet hot path + neighborhood centering)
# ----------------------------------------------------------------------------
def _encoder_kernel(pts_ref, ctr_ref,
                    w1_ref, b1_ref,
                    w2_ref, b2_ref,
                    w3l_ref, w3g_ref, b3_ref,
                    w4_ref, b4_ref,
                    out_ref):
    tg, m, _ = pts_ref.shape
    c_out = out_ref.shape[-1]
    rows = tg * m
    bf16 = jnp.bfloat16

    pts = pts_ref[...]                      # (tg, m, 3)  grouped points (un-centered)
    ctr = ctr_ref[...]                      # (tg, 3)     group centers
    w1 = w1_ref[...]                        # (3, 128)    BN-folded, f32
    b1 = b1_ref[...]                        # (1, 128)

    # First conv (K=3) as 3 VPU FMAs; centering folded into a per-group bias:
    #   (pts - ctr) @ W1 + b1  ==  pts @ W1 + (b1 - ctr @ W1)
    gbias = b1 - (ctr[:, 0:1] * w1[0:1, :]
                  + ctr[:, 1:2] * w1[1:2, :]
                  + ctr[:, 2:3] * w1[2:3, :])               # (tg, 128)
    h = (pts[:, :, 0:1] * w1[0:1, :]
         + pts[:, :, 1:2] * w1[1:2, :]
         + pts[:, :, 2:3] * w1[2:3, :]
         + gbias[:, None, :])                               # (tg, m, 128)
    h = jnp.maximum(h, 0.0)                                 # BN already folded -> just ReLU

    # Conv1d(128, 256): (rows,128)@(128,256) on the MXU, bf16 in / f32 acc
    f = jnp.dot(h.reshape(rows, 128).astype(bf16), w2_ref[...],
                preferred_element_type=jnp.float32) + b2_ref[...]        # (rows, 256) f32
    f3 = f.reshape(tg, m, 256)

    # Per-group global max over the m points (sublane/XLU reduction)
    fg = jnp.max(f3, axis=1)                                # (tg, 256)

    # Second conv with the concat eliminated:
    #   cat([global, local], ch) @ W3  ==  fg @ W3[:256]  (+)  local @ W3[256:]
    gcon = jnp.dot(fg.astype(bf16), w3g_ref[...],
                   preferred_element_type=jnp.float32)      # (tg, 512), once per group
    h2 = jnp.dot(f.astype(bf16), w3l_ref[...],
                 preferred_element_type=jnp.float32) + b3_ref[...]       # (rows, 512)
    h2 = h2.reshape(tg, m, 512) + gcon[:, None, :]
    h2 = jnp.maximum(h2, 0.0)                               # BN folded -> just ReLU

    o = jnp.dot(h2.reshape(rows, 512).astype(bf16), w4_ref[...],
                preferred_element_type=jnp.float32) + b4_ref[...]        # (rows, c_out)

    # Final per-group max pool -> (tg, c_out)
    out_ref[...] = jnp.max(o.reshape(tg, m, c_out), axis=1)


# ----------------------------------------------------------------------------
# Wrapper: BN folding, w3 split, bf16 casts, tiling, pallas_call
# ----------------------------------------------------------------------------
def _choose_tg(bg, m, target_rows=1024):
    """Largest tg that divides bg, is a multiple of 8, keeps tg*m <= target_rows,
    and (if possible) leaves >= 2 grid blocks for megacore sharding."""
    if bg % 8 != 0:
        return bg                                   # single full-extent block (legal)
    cands = [t for t in range(8, bg + 1, 8) if bg % t == 0 and t * m <= target_rows]
    if not cands:
        return 8
    multi = [t for t in cands if bg // t >= 2]
    return max(multi) if multi else max(cands)


def _fold_and_split_params(p, out_features):
    """Fold eval-mode BatchNorm into the preceding convs, split w3 into
    global/local halves, cast MXU weights to bf16, pad out channels to 128."""
    w1 = p["w1"] * p["s1"]                          # (3,128) f32 (stays f32: VPU path)
    b1 = p["b1"] * p["s1"] + p["t1"]                # (1,128)
    w2 = p["w2"].astype(jnp.bfloat16)               # (128,256)
    b2 = p["b2"]                                    # (1,256)
    w3 = p["w3"] * p["s2"]                          # BN2 fold over output channels
    b3 = p["b3"] * p["s2"] + p["t2"]                # (1,512)
    w3g = w3[:256, :].astype(jnp.bfloat16)          # acts on per-group global feature
    w3l = w3[256:, :].astype(jnp.bfloat16)          # acts on per-point local feature
    w4 = p["w4"]
    b4 = p["b4"]
    c_pad = ((out_features + 127) // 128) * 128     # lane-dense output store
    if c_pad != out_features:
        w4 = jnp.pad(w4, ((0, 0), (0, c_pad - out_features)))
        b4 = jnp.pad(b4, ((0, 0), (0, c_pad - out_features)))
    w4 = w4.astype(jnp.bfloat16)
    return [w1, b1, w2, b2, w3l, w3g, b3, w4, b4], c_pad


def _vmem_estimate_bytes(tg, m, c_pad, weights):
    rows = tg * m
    wbytes = sum(int(np.prod(w.shape)) * w.dtype.itemsize for w in weights)
    io = 2 * (rows * 3 * 4 + tg * 3 * 4 + tg * c_pad * 4)        # double-buffered tiles
    act = rows * (128 + 256 + 512 + c_pad) * 4                   # f32 intermediates
    act += rows * (128 + 256 + 512) * 2                          # bf16 matmul operands
    return 2 * wbytes + io + act


def mini_pointnet_pallas(pts, ctr, p, out_features, tg=None):
    """pts (B*G, M, 3) grouped (un-centered) points, ctr (B*G, 3) -> (B*G, C)."""
    bg, m, _ = pts.shape

    # Pad the point axis to a sublane multiple by duplicating a neighbor
    # (duplicated points leave both max-pools unchanged).
    m_pad = ((m + 7) // 8) * 8
    if m_pad != m:
        pad = jnp.broadcast_to(pts[:, :1, :], (bg, m_pad - m, 3))
        pts = jnp.concatenate([pts, pad], axis=1)
        m = m_pad

    if tg is None:
        tg = _choose_tg(bg, m)
    assert bg % tg == 0, "tile size must divide number of groups"
    assert tg % 8 == 0 or tg == bg, "tg must be a multiple of 8 (or cover all groups)"
    n_blocks = bg // tg

    weights, c_pad = _fold_and_split_params(p, out_features)

    def full_spec(arr):
        nd = arr.ndim
        return pl.BlockSpec(arr.shape, lambda i, _nd=nd: (0,) * _nd)

    in_specs = [
        pl.BlockSpec((tg, m, 3), lambda i: (i, 0, 0)),   # grouped points tile
        pl.BlockSpec((tg, 3), lambda i: (i, 0)),         # centers tile
    ] + [full_spec(w) for w in weights]                  # weights resident across grid

    out_spec = pl.BlockSpec((tg, c_pad), lambda i: (i, 0))

    vmem_limit = int(min(56 * 2**20,
                         max(32 * 2**20,
                             2 * _vmem_estimate_bytes(tg, m, c_pad, weights))))

    out = pl.pallas_call(
        _encoder_kernel,
        out_shape=jax.ShapeDtypeStruct((bg, c_pad), jnp.float32),
        grid_spec=pltpu.PrefetchScalarGridSpec(
            num_scalar_prefetch=0,
            grid=(n_blocks,),
            in_specs=in_specs,
            out_specs=out_spec,
        ),
        compiler_params=pltpu.CompilerParams(
            dimension_semantics=("parallel",),
            vmem_limit_bytes=vmem_limit),
    )(pts, ctr, *weights)

    if c_pad != out_features:
        out = out[:, :out_features]
    return out


def pointnet_group_feat(xyz, params, num_group, group_size, out_features, tg=None):
    """Full PointNetGroupFeat forward.  xyz (B, N, 3) -> ((B, G, C), (B, G, 3))."""
    b = xyz.shape[0]
    center = fps(xyz, num_group)                          # (B, G, 3)
    grouped = knn_gather(xyz, center, group_size)         # (B, G, M, 3)
    bg = b * num_group
    pts = grouped.reshape(bg, group_size, 3)
    ctr = center.reshape(bg, 3)
    out = mini_pointnet_pallas(pts, ctr, params, out_features, tg)
    return out.reshape(b, num_group, out_features), center


# ----------------------------------------------------------------------------
# Deterministic parameter init (matches module layer shapes)
# ----------------------------------------------------------------------------
def init_params(key, out_features):
    ks = jax.random.split(key, 8)
    eps = 1e-5

    def wconv(k, cin, cout):
        bound = 1.0 / np.sqrt(cin)
        return jax.random.uniform(k, (cin, cout), jnp.float32, -bound, bound)

    def bconv(k, cin, cout):
        bound = 1.0 / np.sqrt(cin)
        return jax.random.uniform(k, (1, cout), jnp.float32, -bound, bound)

    # TODO(synk): BatchNorm1d is applied in eval mode (running stats); training-mode
    # batch statistics across (B*G, N) are not reproduced here.
    def bn_fold(c):
        gamma = jnp.ones((1, c), jnp.float32)
        beta = jnp.zeros((1, c), jnp.float32)
        mean = jnp.zeros((1, c), jnp.float32)
        var = jnp.ones((1, c), jnp.float32)
        scale = gamma / jnp.sqrt(var + eps)
        shift = beta - mean * scale
        return scale, shift

    s1, t1 = bn_fold(128)
    s2, t2 = bn_fold(512)
    return dict(
        w1=wconv(ks[0], 3, 128), b1=bconv(ks[1], 3, 128), s1=s1, t1=t1,
        w2=wconv(ks[2], 128, 256), b2=bconv(ks[3], 128, 256),
        w3=wconv(ks[4], 512, 512), b3=bconv(ks[5], 512, 512), s2=s2, t2=t2,
        w4=wconv(ks[6], 512, out_features), b4=bconv(ks[7], 512, out_features),
    )


# ----------------------------------------------------------------------------
# Pure-JAX reference (f32, concat form — mirrors the PyTorch module)
# ----------------------------------------------------------------------------
def reference(xyz, p, num_group, group_size, out_features):
    b = xyz.shape[0]
    center = fps(xyz, num_group)
    grouped = knn_gather(xyz, center, group_size)
    neigh = grouped - center[:, :, None, :]
    x = neigh.reshape(b * num_group, group_size, 3)
    h = jnp.einsum("gmc,cd->gmd", x, p["w1"]) + p["b1"]
    h = jnp.maximum(h * p["s1"] + p["t1"], 0.0)
    f = jnp.einsum("gmc,cd->gmd", h, p["w2"]) + p["b2"]
    fg = jnp.max(f, axis=1, keepdims=True)
    cat = jnp.concatenate([jnp.broadcast_to(fg, f.shape), f], axis=-1)
    h2 = jnp.einsum("gmc,cd->gmd", cat, p["w3"]) + p["b3"]
    h2 = jnp.maximum(h2 * p["s2"] + p["t2"], 0.0)
    o = jnp.einsum("gmc,cd->gmd", h2, p["w4"]) + p["b4"]
    out = jnp.max(o, axis=1).reshape(b, num_group, out_features)
    return out, center


if __name__ == "__main__":
    # Small shapes consistent with the module (B, N, 3) point clouds.
    B, N = 2, 64
    NUM_GROUP, GROUP_SIZE, OUT_FEATURES = 8, 8, 128

    key = jax.random.PRNGKey(0)
    kx, kp = jax.random.split(key)
    xyz = jax.random.uniform(kx, (B, N, 3), jnp.float32)
    params = init_params(kp, OUT_FEATURES)

    out, center = pointnet_group_feat(
        xyz, params, NUM_GROUP, GROUP_SIZE, OUT_FEATURES)
    out = jax.block_until_ready(out)
    center = jax.block_until_ready(center)

    assert out.shape == (B, NUM_GROUP, OUT_FEATURES)
    assert center.shape == (B, NUM_GROUP, 3)

    ref_out, ref_center = reference(xyz, params, NUM_GROUP, GROUP_SIZE, OUT_FEATURES)
    # bf16 matmul inputs (f32 accumulation) -> slightly relaxed tolerance vs f32 ref.
    np.testing.assert_allclose(np.asarray(out), np.asarray(ref_out),
                               rtol=2e-2, atol=2e-2)
    np.testing.assert_allclose(np.asarray(center), np.asarray(ref_center),
                               rtol=1e-5, atol=1e-5)

    print("KERNEL_OK")
</pallas_src>

<mosaic_0001>
module attributes {stable_mosaic.version = 11 : i64} {
  func.func @_encoder_kernel(%arg0: i32, %arg1: memref<8x8x3xf32, #tpu.memory_space<vmem>>, %arg2: memref<8x3xf32, #tpu.memory_space<vmem>>, %arg3: memref<3x128xf32, #tpu.memory_space<vmem>>, %arg4: memref<1x128xf32, #tpu.memory_space<vmem>>, %arg5: memref<128x256xbf16, #tpu.memory_space<vmem>>, %arg6: memref<1x256xf32, #tpu.memory_space<vmem>>, %arg7: memref<256x512xbf16, #tpu.memory_space<vmem>>, %arg8: memref<256x512xbf16, #tpu.memory_space<vmem>>, %arg9: memref<1x512xf32, #tpu.memory_space<vmem>>, %arg10: memref<512x128xbf16, #tpu.memory_space<vmem>>, %arg11: memref<1x128xf32, #tpu.memory_space<vmem>>, %arg12: memref<8x128xf32, #tpu.memory_space<vmem>>) attributes {dimension_semantics = [#tpu.dimension_semantics<parallel>], iteration_bounds = array<i64: 2>, scalar_prefetch = 0 : i64, scratch_operands = 0 : i64, tpu.core_type = #tpu.core_type<tc>, window_params = [{transform_indices = @transform_0, window_bounds = array<i64: 8, 8, 3>}, {transform_indices = @transform_1, window_bounds = array<i64: 8, 3>}, {pipeline_mode = #tpu.pipeline_mode<synchronous>, transform_indices = @transform_2, window_bounds = array<i64: 3, 128>}, {pipeline_mode = #tpu.pipeline_mode<synchronous>, transform_indices = @transform_3, window_bounds = array<i64: 1, 128>}, {pipeline_mode = #tpu.pipeline_mode<synchronous>, transform_indices = @transform_4, window_bounds = array<i64: 128, 256>}, {pipeline_mode = #tpu.pipeline_mode<synchronous>, transform_indices = @transform_5, window_bounds = array<i64: 1, 256>}, {pipeline_mode = #tpu.pipeline_mode<synchronous>, transform_indices = @transform_6, window_bounds = array<i64: 256, 512>}, {pipeline_mode = #tpu.pipeline_mode<synchronous>, transform_indices = @transform_7, window_bounds = array<i64: 256, 512>}, {pipeline_mode = #tpu.pipeline_mode<synchronous>, transform_indices = @transform_8, window_bounds = array<i64: 1, 512>}, {pipeline_mode = #tpu.pipeline_mode<synchronous>, transform_indices = @transform_9, window_bounds = array<i64: 512, 128>}, {pipeline_mode = #tpu.pipeline_mode<synchronous>, transform_indices = @transform_10, window_bounds = array<i64: 1, 128>}, {transform_indices = @transform_11, window_bounds = array<i64: 8, 128>}]} {
    %c0 = arith.constant 0 : index
    %c0_0 = arith.constant 0 : index
    %c0_1 = arith.constant 0 : index
    %0 = vector.load %arg1[%c0, %c0_0, %c0_1] : memref<8x8x3xf32, #tpu.memory_space<vmem>>, vector<8x8x3xf32>
    %c0_2 = arith.constant 0 : index
    %c0_3 = arith.constant 0 : index
    %1 = vector.load %arg2[%c0_2, %c0_3] : memref<8x3xf32, #tpu.memory_space<vmem>>, vector<8x3xf32>
    %c0_4 = arith.constant 0 : index
    %c0_5 = arith.constant 0 : index
    %2 = vector.load %arg3[%c0_4, %c0_5] : memref<3x128xf32, #tpu.memory_space<vmem>>, vector<3x128xf32>
    %c0_6 = arith.constant 0 : index
    %c0_7 = arith.constant 0 : index
    %3 = vector.load %arg4[%c0_6, %c0_7] : memref<1x128xf32, #tpu.memory_space<vmem>>, vector<1x128xf32>
    %4 = vector.extract_strided_slice %1 {offsets = [0, 0], sizes = [8, 1], strides = [1, 1]} : vector<8x3xf32> to vector<8x1xf32>
    %5 = vector.extract_strided_slice %2 {offsets = [0, 0], sizes = [1, 128], strides = [1, 1]} : vector<3x128xf32> to vector<1x128xf32>
    %6 = vector.broadcast %4 : vector<8x1xf32> to vector<8x128xf32>
    %7 = vector.broadcast %5 : vector<1x128xf32> to vector<8x128xf32>
    %8 = arith.mulf %6, %7 : vector<8x128xf32>
    %9 = vector.extract_strided_slice %1 {offsets = [0, 1], sizes = [8, 1], strides = [1, 1]} : vector<8x3xf32> to vector<8x1xf32>
    %10 = vector.extract_strided_slice %2 {offsets = [1, 0], sizes = [1, 128], strides = [1, 1]} : vector<3x128xf32> to vector<1x128xf32>
    %11 = vector.broadcast %9 : vector<8x1xf32> to vector<8x128xf32>
    %12 = vector.broadcast %10 : vector<1x128xf32> to vector<8x128xf32>
    %13 = arith.mulf %11, %12 : vector<8x128xf32>
    %14 = arith.addf %8, %13 : vector<8x128xf32>
    %15 = vector.extract_strided_slice %1 {offsets = [0, 2], sizes = [8, 1], strides = [1, 1]} : vector<8x3xf32> to vector<8x1xf32>
    %16 = vector.extract_strided_slice %2 {offsets = [2, 0], sizes = [1, 128], strides = [1, 1]} : vector<3x128xf32> to vector<1x128xf32>
    %17 = vector.broadcast %15 : vector<8x1xf32> to vector<8x128xf32>
    %18 = vector.broadcast %16 : vector<1x128xf32> to vector<8x128xf32>
    %19 = arith.mulf %17, %18 : vector<8x128xf32>
    %20 = arith.addf %14, %19 : vector<8x128xf32>
    %21 = vector.broadcast %3 : vector<1x128xf32> to vector<8x128xf32>
    %22 = arith.subf %21, %20 : vector<8x128xf32>
    %23 = vector.extract_strided_slice %0 {offsets = [0, 0, 0], sizes = [8, 8, 1], strides = [1, 1, 1]} : vector<8x8x3xf32> to vector<8x8x1xf32>
    %24 = vector.extract_strided_slice %2 {offsets = [0, 0], sizes = [1, 128], strides = [1, 1]} : vector<3x128xf32> to vector<1x128xf32>
    %25 = vector.shape_cast %24 : vector<1x128xf32> to vector<1x1x128xf32>
    %26 = vector.broadcast %23 : vector<8x8x1xf32> to vector<8x8x128xf32>
    %27 = vector.broadcast %25 : vector<1x1x128xf32> to vector<8x8x128xf32>
    %28 = arith.mulf %26, %27 : vector<8x8x128xf32>
    %29 = vector.extract_strided_slice %0 {offsets = [0, 0, 1], sizes = [8, 8, 1], strides = [1, 1, 1]} : vector<8x8x3xf32> to vector<8x8x1xf32>
    %30 = vector.extract_strided_slice %2 {offsets = [1, 0], sizes = [1, 128], strides = [1, 1]} : vector<3x128xf32> to vector<1x128xf32>
    %31 = vector.shape_cast %30 : vector<1x128xf32> to vector<1x1x128xf32>
    %32 = vector.broadcast %29 : vector<8x8x1xf32> to vector<8x8x128xf32>
    %33 = vector.broadcast %31 : vector<1x1x128xf32> to vector<8x8x128xf32>
    %34 = arith.mulf %32, %33 : vector<8x8x128xf32>
    %35 = arith.addf %28, %34 : vector<8x8x128xf32>
    %36 = vector.extract_strided_slice %0 {offsets = [0, 0, 2], sizes = [8, 8, 1], strides = [1, 1, 1]} : vector<8x8x3xf32> to vector<8x8x1xf32>
    %37 = vector.extract_strided_slice %2 {offsets = [2, 0], sizes = [1, 128], strides = [1, 1]} : vector<3x128xf32> to vector<1x128xf32>
    %38 = vector.shape_cast %37 : vector<1x128xf32> to vector<1x1x128xf32>
    %39 = vector.broadcast %36 : vector<8x8x1xf32> to vector<8x8x128xf32>
    %40 = vector.broadcast %38 : vector<1x1x128xf32> to vector<8x8x128xf32>
    %41 = arith.mulf %39, %40 : vector<8x8x128xf32>
    %42 = arith.addf %35, %41 : vector<8x8x128xf32>
    %43 = vector.shape_cast %22 : vector<8x128xf32> to vector<8x1x128xf32>
    %44 = vector.broadcast %43 : vector<8x1x128xf32> to vector<8x8x128xf32>
    %45 = arith.addf %42, %44 : vector<8x8x128xf32>
    %cst = arith.constant 0.000000e+00 : f32
    %46 = vector.broadcast %cst : f32 to vector<8x8x128xf32>
    %47 = arith.maximumf %45, %46 : vector<8x8x128xf32>
    %48 = vector.shape_cast %47 : vector<8x8x128xf32> to vector<64x128xf32>
    %49 = arith.truncf %48 : vector<64x128xf32> to vector<64x128xbf16>
    %c0_8 = arith.constant 0 : index
    %c0_9 = arith.constant 0 : index
    %50 = vector.load %arg5[%c0_8, %c0_9] : memref<128x256xbf16, #tpu.memory_space<vmem>>, vector<128x256xbf16>
    %cst_10 = arith.constant dense<0.000000e+00> : vector<64x256xf32>
    %51 = tpu.matmul %49, %50, %cst_10 {dimension_numbers = #tpu.dot_dimension_numbers<[1], [0], [0], [1], [0, 0, 1, 1], [], []>} : vector<64x128xbf16>, vector<128x256xbf16>, vector<64x256xf32> -> vector<64x256xf32>
    %c0_11 = arith.constant 0 : index
    %c0_12 = arith.constant 0 : index
    %52 = vector.load %arg6[%c0_11, %c0_12] : memref<1x256xf32, #tpu.memory_space<vmem>>, vector<1x256xf32>
    %53 = vector.broadcast %52 : vector<1x256xf32> to vector<64x256xf32>
    %54 = arith.addf %51, %53 : vector<64x256xf32>
    %55 = vector.shape_cast %54 : vector<64x256xf32> to vector<8x8x256xf32>
    %cst_13 = arith.constant dense<0xFF800000> : vector<8x256xf32>
    %56 = vector.multi_reduction <maximumf>, %55, %cst_13 [1] : vector<8x8x256xf32> to vector<8x256xf32>
    %57 = arith.truncf %56 : vector<8x256xf32> to vector<8x256xbf16>
    %c0_14 = arith.constant 0 : index
    %c0_15 = arith.constant 0 : index
    %58 = vector.load %arg8[%c0_14, %c0_15] : memref<256x512xbf16, #tpu.memory_space<vmem>>, vector<256x512xbf16>
    %cst_16 = arith.constant dense<0.000000e+00> : vector<8x512xf32>
    %59 = tpu.matmul %57, %58, %cst_16 {dimension_numbers = #tpu.dot_dimension_numbers<[1], [0], [0], [1], [0, 0, 1, 1], [], []>} : vector<8x256xbf16>, vector<256x512xbf16>, vector<8x512xf32> -> vector<8x512xf32>
    %60 = arith.truncf %54 : vector<64x256xf32> to vector<64x256xbf16>
    %c0_17 = arith.constant 0 : index
    %c0_18 = arith.constant 0 : index
    %61 = vector.load %arg7[%c0_17, %c0_18] : memref<256x512xbf16, #tpu.memory_space<vmem>>, vector<256x512xbf16>
    %cst_19 = arith.constant dense<0.000000e+00> : vector<64x512xf32>
    %62 = tpu.matmul %60, %61, %cst_19 {dimension_numbers = #tpu.dot_dimension_numbers<[1], [0], [0], [1], [0, 0, 1, 1], [], []>} : vector<64x256xbf16>, vector<256x512xbf16>, vector<64x512xf32> -> vector<64x512xf32>
    %c0_20 = arith.constant 0 : index
    %c0_21 = arith.constant 0 : index
    %63 = vector.load %arg9[%c0_20, %c0_21] : memref<1x512xf32, #tpu.memory_space<vmem>>, vector<1x512xf32>
    %64 = vector.broadcast %63 : vector<1x512xf32> to vector<64x512xf32>
    %65 = arith.addf %62, %64 : vector<64x512xf32>
    %66 = vector.shape_cast %65 : vector<64x512xf32> to vector<8x8x512xf32>
    %67 = vector.shape_cast %59 : vector<8x512xf32> to vector<8x1x512xf32>
    %68 = vector.broadcast %67 : vector<8x1x512xf32> to vector<8x8x512xf32>
    %69 = arith.addf %66, %68 : vector<8x8x512xf32>
    %cst_22 = arith.constant 0.000000e+00 : f32
    %70 = vector.broadcast %cst_22 : f32 to vector<8x8x512xf32>
    %71 = arith.maximumf %69, %70 : vector<8x8x512xf32>
    %72 = vector.shape_cast %71 : vector<8x8x512xf32> to vector<64x512xf32>
    %73 = arith.truncf %72 : vector<64x512xf32> to vector<64x512xbf16>
    %c0_23 = arith.constant 0 : index
    %c0_24 = arith.constant 0 : index
    %74 = vector.load %arg10[%c0_23, %c0_24] : memref<512x128xbf16, #tpu.memory_space<vmem>>, vector<512x128xbf16>
    %cst_25 = arith.constant dense<0.000000e+00> : vector<64x128xf32>
    %75 = tpu.matmul %73, %74, %cst_25 {dimension_numbers = #tpu.dot_dimension_numbers<[1], [0], [0], [1], [0, 0, 1, 1], [], []>} : vector<64x512xbf16>, vector<512x128xbf16>, vector<64x128xf32> -> vector<64x128xf32>
    %c0_26 = arith.constant 0 : index
    %c0_27 = arith.constant 0 : index
    %76 = vector.load %arg11[%c0_26, %c0_27] : memref<1x128xf32, #tpu.memory_space<vmem>>, vector<1x128xf32>
    %77 = vector.broadcast %76 : vector<1x128xf32> to vector<64x128xf32>
    %78 = arith.addf %75, %77 : vector<64x128xf32>
    %79 = vector.shape_cast %78 : vector<64x128xf32> to vector<8x8x128xf32>
    %cst_28 = arith.constant dense<0xFF800000> : vector<8x128xf32>
    %80 = vector.multi_reduction <maximumf>, %79, %cst_28 [1] : vector<8x8x128xf32> to vector<8x128xf32>
    %c0_29 = arith.constant 0 : index
    %c0_30 = arith.constant 0 : index
    %81 = vector.load %arg12[%c0_29, %c0_30] : memref<8x128xf32, #tpu.memory_space<vmem>>, vector<8x128xf32>
    tpu.vector_store %arg12[%c0_29, %c0_30], %80 {strides = array<i32>} : memref<8x128xf32, #tpu.memory_space<vmem>>, vector<8x128xf32>,
    return
  }
  func.func @transform_0(%arg0: i32) -> (i32, i32, i32) {
    %c0_i32 = arith.constant 0 : i32
    %c0_i32_0 = arith.constant 0 : i32
    %c0_i32_1 = arith.constant 0 : i32
    return %arg0, %c0_i32, %c0_i32_0 : i32, i32, i32
  }
  func.func @transform_1(%arg0: i32) -> (i32, i32) {
    %c0_i32 = arith.constant 0 : i32
    %c0_i32_0 = arith.constant 0 : i32
    return %arg0, %c0_i32 : i32, i32
  }
  func.func @transform_2(%arg0: i32) -> (i32, i32) {
    %c0_i32 = arith.constant 0 : i32
    %c0_i32_0 = arith.constant 0 : i32
    %c0_i32_1 = arith.constant 0 : i32
    return %c0_i32, %c0_i32_0 : i32, i32
  }
  func.func @transform_3(%arg0: i32) -> (i32, i32) {
    %c0_i32 = arith.constant 0 : i32
    %c0_i32_0 = arith.constant 0 : i32
    %c0_i32_1 = arith.constant 0 : i32
    return %c0_i32, %c0_i32_0 : i32, i32
  }
  func.func @transform_4(%arg0: i32) -> (i32, i32) {
    %c0_i32 = arith.constant 0 : i32
    %c0_i32_0 = arith.constant 0 : i32
    %c0_i32_1 = arith.constant 0 : i32
    return %c0_i32, %c0_i32_0 : i32, i32
  }
  func.func @transform_5(%arg0: i32) -> (i32, i32) {
    %c0_i32 = arith.constant 0 : i32
    %c0_i32_0 = arith.constant 0 : i32
    %c0_i32_1 = arith.constant 0 : i32
    return %c0_i32, %c0_i32_0 : i32, i32
  }
  func.func @transform_6(%arg0: i32) -> (i32, i32) {
    %c0_i32 = arith.constant 0 : i32
    %c0_i32_0 = arith.constant 0 : i32
    %c0_i32_1 = arith.constant 0 : i32
    return %c0_i32, %c0_i32_0 : i32, i32
  }
  func.func @transform_7(%arg0: i32) -> (i32, i32) {
    %c0_i32 = arith.constant 0 : i32
    %c0_i32_0 = arith.constant 0 : i32
    %c0_i32_1 = arith.constant 0 : i32
    return %c0_i32, %c0_i32_0 : i32, i32
  }
  func.func @transform_8(%arg0: i32) -> (i32, i32) {
    %c0_i32 = arith.constant 0 : i32
    %c0_i32_0 = arith.constant 0 : i32
    %c0_i32_1 = arith.constant 0 : i32
    return %c0_i32, %c0_i32_0 : i32, i32
  }
  func.func @transform_9(%arg0: i32) -> (i32, i32) {
    %c0_i32 = arith.constant 0 : i32
    %c0_i32_0 = arith.constant 0 : i32
    %c0_i32_1 = arith.constant 0 : i32
    return %c0_i32, %c0_i32_0 : i32, i32
  }
  func.func @transform_10(%arg0: i32) -> (i32, i32) {
    %c0_i32 = arith.constant 0 : i32
    %c0_i32_0 = arith.constant 0 : i32
    %c0_i32_1 = arith.constant 0 : i32
    return %c0_i32, %c0_i32_0 : i32, i32
  }
  func.func @transform_11(%arg0: i32) -> (i32, i32) {
    %c0_i32 = arith.constant 0 : i32
    %c0_i32_0 = arith.constant 0 : i32
    return %arg0, %c0_i32 : i32, i32
  }
}

</mosaic_0001>

<llo_original>
// kernel: tpu_custom_call.1
$region0: #{tpu_custom_call.1}
  #allocation0 [shape = 'u32[]', space=smem, size = 0x4, offset = 0x4, fixed_abs, tag = 'smem constant byte address 0x4 - core index']
  #allocation1 [shape = 'u32[144,128]{1,0:T(1,128)}', space=vmem, size = 0x12000, scoped, tag = 'internal scratch']
  %s0 = inlined_call_operand.vmem [shape: f32[16,8,3], index: 0, kind: input, shape index: {}]
  %s1 = inlined_call_operand.vmem [shape: f32[16,3], index: 1, kind: input, shape index: {}]
  %s2 = inlined_call_operand.vmem [shape: f32[3,128], index: 2, kind: input, shape index: {}]
  %s3 = inlined_call_operand.vmem [shape: f32[1,128], index: 3, kind: input, shape index: {}]
  %s4 = inlined_call_operand.vmem [shape: bf16[128,256], index: 4, kind: input, shape index: {}]
  %s5 = inlined_call_operand.vmem [shape: f32[1,256], index: 5, kind: input, shape index: {}]
  %s6 = inlined_call_operand.hbm [shape: bf16[256,512], index: 6, kind: input, shape index: {}]
  %s7 = inlined_call_operand.hbm [shape: bf16[256,512], index: 7, kind: input, shape index: {}]
  %s8 = inlined_call_operand.vmem [shape: f32[1,512], index: 8, kind: input, shape index: {}]
  %s9 = inlined_call_operand.hbm [shape: bf16[512,128], index: 9, kind: input, shape index: {}]
  %s10 = inlined_call_operand.vmem [shape: f32[1,128], index: 10, kind: input, shape index: {}]
  %s11 = inlined_call_operand.hbm [shape: f32[16,128], index: 11, kind: output, shape index: {}]
  %s12 = sld [smem:[#allocation0]]
  $region89: #{tpu_custom_call.1} parent=0
    _
  %s14 = ssub.s32 1, %s12
  %s15 = scalar_select 0, %s14, %s12
  $region1: #{tpu_custom_call.1} parent=0
    #allocation2 [shape = 'u8[262144]{0}', space=vmem, size = 0x40000, scoped, tag = 'input window, operand 6, single buffered']
    #allocation3 [shape = 's32[2]{0}', space=sflag, size = 0x8, scoped, tag = 'scoped memory for tpu_custom_call.1']
    #allocation4 [shape = 's32[2]{0}', space=sflag, size = 0x8, scoped, tag = 'scoped memory for tpu_custom_call.1']
    #allocation5 [shape = 'u8[262144]{0}', space=vmem, size = 0x40000, scoped, tag = 'input window, operand 7, single buffered']
    #allocation6 [shape = 's32[1]{0}', space=sflag, size = 0x4, scoped, tag = 'scoped memory for tpu_custom_call.1']
    #allocation7 [shape = 'u8[131072]{0}', space=vmem, size = 0x20000, scoped, tag = 'input window, operand 9, single buffered']
    #allocation8 [shape = 'u8[8192]{0}', space=vmem, size = 0x2000, scoped, tag = 'output window, operand 0']
    %16 = vsyncpa [#allocation3], 0
    %17 = vsyncpa [#allocation6], 0
    %18 = vsyncpa [#allocation4], 0
    %s19 = scalar_lea.sflag [#allocation4], 1
    %20 = vsyncpa %s19, 0
    loop: start=0, step=1, limit=4
    $region2: #{tpu_custom_call.1} parent=1 // loop_pre_header
      _
    $region3: #{tpu_custom_call.1} parent=1 // loop_header
      %s22 = sphi 0, %s26
      %p23 = scmp.ge.s32.totalorder %s22, 4
      %s32 = sphi 0, %s34
      %s35 = sphi 0, %s32
      %s36 = sphi 0, %s35
      %s52 = sphi 0, %s36
      %s58 = sphi 0, %s60
      %s61 = sphi 0, %s58
      %s62 = sphi 0, %s61
      %s78 = sphi 0, %s62
      %s82 = sphi 0, %s82
      %s84 = sphi 0, %s82
      %s85 = sphi 0, %s84
      %s99 = sphi 0, %s85
      %s103 = sphi 0, %s103
      %s105 = sphi 0, %s103
      %s106 = sphi 0, %s105
      %s120 = sphi 0, %s106
      %s124 = sphi 0, %s124
      %s126 = sphi 0, %s124
      %s127 = sphi 0, %s126
      %s141 = sphi 0, %s127
      %s145 = sphi 0, %s145
      %s147 = sphi 0, %s145
      %s148 = sphi 0, %s147
      %s162 = sphi 0, %s148
      %s166 = sphi 0, %s166
      %s168 = sphi 0, %s166
      %s169 = sphi 0, %s168
      %s183 = sphi 0, %s169
      %s187 = sphi 0, %s187
      %s189 = sphi 0, %s187
      %s190 = sphi 0, %s189
      %s204 = sphi 0, %s190
      %s208 = sphi 0, %s208
      %s210 = sphi 0, %s208
      %s211 = sphi 0, %s210
      %s225 = sphi 0, %s211
      %s229 = sphi 0, %s229
      %s231 = sphi 0, %s229
      %s232 = sphi 0, %s231
      %s246 = sphi 0, %s232
      %s250 = sphi 0, %s250
      %s252 = sphi 0, %s250
      %s253 = sphi 0, %s252
      %s267 = sphi 0, %s253
      %s273 = sphi 0, %s275
      %s276 = sphi 0, %s273
      %s277 = sphi 0, %s276
      %s293 = sphi 0, %s277
    $region4: #{tpu_custom_call.1} parent=1 // loop_header_branch
      %25 = sbr.rel (%p23) target = $region8
    $region5: #{tpu_custom_call.1} parent=1 // loop_body
      %s27 = ssub.s32 %s22, 1
      %s28 = ssub.s32 %s22, 2
      %s29 = sadd.s32 %s22, 1
      %s30 = ssub.s32 %s22, %s29
      %p31 = scmp.eq.s32.totalorder %s30, 0
      %s33 = sadd.s32 %s32, 1
      %s34 = scalar_select %p31, %s32, %s33
      %p37 = pneg %p31
      %p38 = scmp.eq.s32.totalorder %s22, 1
      %p39 = por %p37, %p38
      %p40 = scmp.ne.s32.totalorder %s32, %s35
      %p41 = scmp.eq.s32.totalorder %s22, 0
      %p42 = por %p40, %p41
      %p43 = scmp.ne.s32.totalorder %s32, %s35
      %p44 = scmp.eq.s32.totalorder %s27, 1
      %p45 = por %p43, %p44
      %p46 = scmp.ne.s32.totalorder %s35, %s36
      %p47 = scmp.eq.s32.totalorder %s27, 0
      %p48 = por %p46, %p47
      %p49 = scmp.ne.s32.totalorder %s35, %s36
      %p50 = scmp.eq.s32.totalorder %s28, 1
      %p51 = por %p49, %p50
      %p53 = scmp.ne.s32.totalorder %s36, %s52
      %p54 = scmp.eq.s32.totalorder %s28, 0
      %p55 = por %p53, %p54
      %s56 = ssub.s32 %s22, %s29
      %p57 = scmp.eq.s32.totalorder %s56, 0
      %s59 = sadd.s32 %s58, 1
      %s60 = scalar_select %p57, %s58, %s59
      %p63 = pneg %p57
      %p64 = scmp.eq.s32.totalorder %s22, 1
      %p65 = por %p63, %p64
      %p66 = scmp.ne.s32.totalorder %s58, %s61
      %p67 = scmp.eq.s32.totalorder %s22, 0
      %p68 = por %p66, %p67
      %p69 = scmp.ne.s32.totalorder %s58, %s61
      %p70 = scmp.eq.s32.totalorder %s27, 1
      %p71 = por %p69, %p70
      %p72 = scmp.ne.s32.totalorder %s61, %s62
      %p73 = scmp.eq.s32.totalorder %s27, 0
      %p74 = por %p72, %p73
      %p75 = scmp.ne.s32.totalorder %s61, %s62
      %p76 = scmp.eq.s32.totalorder %s28, 1
      %p77 = por %p75, %p76
      %p79 = scmp.ne.s32.totalorder %s62, %s78
      %p80 = scmp.eq.s32.totalorder %s28, 0
      %p81 = por %p79, %p80
      %s83 = sadd.s32 %s82, 1
      %p86 = scmp.eq.s32.totalorder %s22, 1
      %p87 = scmp.ne.s32.totalorder %s82, %s84
      %p88 = scmp.eq.s32.totalorder %s22, 0
      %p89 = por %p87, %p88
      %p90 = scmp.ne.s32.totalorder %s82, %s84
      %p91 = scmp.eq.s32.totalorder %s27, 1
      %p92 = por %p90, %p91
      %p93 = scmp.ne.s32.totalorder %s84, %s85
      %p94 = scmp.eq.s32.totalorder %s27, 0
      %p95 = por %p93, %p94
      %p96 = scmp.ne.s32.totalorder %s84, %s85
      %p97 = scmp.eq.s32.totalorder %s28, 1
      %p98 = por %p96, %p97
      %p100 = scmp.ne.s32.totalorder %s85, %s99
      %p101 = scmp.eq.s32.totalorder %s28, 0
      %p102 = por %p100, %p101
      %s104 = sadd.s32 %s103, 1
      %p107 = scmp.eq.s32.totalorder %s22, 1
      %p108 = scmp.ne.s32.totalorder %s103, %s105
      %p109 = scmp.eq.s32.totalorder %s22, 0
      %p110 = por %p108, %p109
      %p111 = scmp.ne.s32.totalorder %s103, %s105
      %p112 = scmp.eq.s32.totalorder %s27, 1
      %p113 = por %p111, %p112
      %p114 = scmp.ne.s32.totalorder %s105, %s106
      %p115 = scmp.eq.s32.totalorder %s27, 0
      %p116 = por %p114, %p115
      %p117 = scmp.ne.s32.totalorder %s105, %s106
      %p118 = scmp.eq.s32.totalorder %s28, 1
      %p119 = por %p117, %p118
      %p121 = scmp.ne.s32.totalorder %s106, %s120
      %p122 = scmp.eq.s32.totalorder %s28, 0
      %p123 = por %p121, %p122
      %s125 = sadd.s32 %s124, 1
      %p128 = scmp.eq.s32.totalorder %s22, 1
      %p129 = scmp.ne.s32.totalorder %s124, %s126
      %p130 = scmp.eq.s32.totalorder %s22, 0
      %p131 = por %p129, %p130
      %p132 = scmp.ne.s32.totalorder %s124, %s126
      %p133 = scmp.eq.s32.totalorder %s27, 1
      %p134 = por %p132, %p133
      %p135 = scmp.ne.s32.totalorder %s126, %s127
      %p136 = scmp.eq.s32.totalorder %s27, 0
      %p137 = por %p135, %p136
      %p138 = scmp.ne.s32.totalorder %s126, %s127
      %p139 = scmp.eq.s32.totalorder %s28, 1
      %p140 = por %p138, %p139
      %p142 = scmp.ne.s32.totalorder %s127, %s141
      %p143 = scmp.eq.s32.totalorder %s28, 0
      %p144 = por %p142, %p143
      %s146 = sadd.s32 %s145, 1
      %p149 = scmp.eq.s32.totalorder %s22, 1
      %p150 = scmp.ne.s32.totalorder %s145, %s147
      %p151 = scmp.eq.s32.totalorder %s22, 0
      %p152 = por %p150, %p151
      %p153 = scmp.ne.s32.totalorder %s145, %s147
      %p154 = scmp.eq.s32.totalorder %s27, 1
      %p155 = por %p153, %p154
      %p156 = scmp.ne.s32.totalorder %s147, %s148
      %p157 = scmp.eq.s32.totalorder %s27, 0
      %p158 = por %p156, %p157
      %p159 = scmp.ne.s32.totalorder %s147, %s148
      %p160 = scmp.eq.s32.totalorder %s28, 1
      %p161 = por %p159, %p160
      %p163 = scmp.ne.s32.totalorder %s148, %s162
      %p164 = scmp.eq.s32.totalorder %s28, 0
      %p165 = por %p163, %p164
      %s167 = sadd.s32 %s166, 1
      %p170 = scmp.eq.s32.totalorder %s22, 1
      %p171 = scmp.ne.s32.totalorder %s166, %s168
      %p172 = scmp.eq.s32.totalorder %s22, 0
      %p173 = por %p171, %p172
      %p174 = scmp.ne.s32.totalorder %s166, %s168
      %p175 = scmp.eq.s32.totalorder %s27, 1
      %p176 = por %p174, %p175
      %p177 = scmp.ne.s32.totalorder %s168, %s169
      %p178 = scmp.eq.s32.totalorder %s27, 0
      %p179 = por %p177, %p178
      %p180 = scmp.ne.s32.totalorder %s168, %s169
      %p181 = scmp.eq.s32.totalorder %s28, 1
      %p182 = por %p180, %p181
      %p184 = scmp.ne.s32.totalorder %s169, %s183
      %p185 = scmp.eq.s32.totalorder %s28, 0
      %p186 = por %p184, %p185
      %s188 = sadd.s32 %s187, 1
      %p191 = scmp.eq.s32.totalorder %s22, 1
      %p192 = scmp.ne.s32.totalorder %s187, %s189
      %p193 = scmp.eq.s32.totalorder %s22, 0
      %p194 = por %p192, %p193
      %p195 = scmp.ne.s32.totalorder %s187, %s189
      %p196 = scmp.eq.s32.totalorder %s27, 1
      %p197 = por %p195, %p196
      %p198 = scmp.ne.s32.totalorder %s189, %s190
      %p199 = scmp.eq.s32.totalorder %s27, 0
      %p200 = por %p198, %p199
      %p201 = scmp.ne.s32.totalorder %s189, %s190
      %p202 = scmp.eq.s32.totalorder %s28, 1
      %p203 = por %p201, %p202
      %p205 = scmp.ne.s32.totalorder %s190, %s204
      %p206 = scmp.eq.s32.totalorder %s28, 0
      %p207 = por %p205, %p206
      %s209 = sadd.s32 %s208, 1
      %p212 = scmp.eq.s32.totalorder %s22, 1
      %p213 = scmp.ne.s32.totalorder %s208, %s210
      %p214 = scmp.eq.s32.totalorder %s22, 0
      %p215 = por %p213, %p214
      %p216 = scmp.ne.s32.totalorder %s208, %s210
      %p217 = scmp.eq.s32.totalorder %s27, 1
      %p218 = por %p216, %p217
      %p219 = scmp.ne.s32.totalorder %s210, %s211
      %p220 = scmp.eq.s32.totalorder %s27, 0
      %p221 = por %p219, %p220
      %p222 = scmp.ne.s32.totalorder %s210, %s211
      %p223 = scmp.eq.s32.totalorder %s28, 1
      %p224 = por %p222, %p223
      %p226 = scmp.ne.s32.totalorder %s211, %s225
      %p227 = scmp.eq.s32.totalorder %s28, 0
      %p228 = por %p226, %p227
      %s230 = sadd.s32 %s229, 1
      %p233 = scmp.eq.s32.totalorder %s22, 1
      %p234 = scmp.ne.s32.totalorder %s229, %s231
      %p235 = scmp.eq.s32.totalorder %s22, 0
      %p236 = por %p234, %p235
      %p237 = scmp.ne.s32.totalorder %s229, %s231
      %p238 = scmp.eq.s32.totalorder %s27, 1
      %p239 = por %p237, %p238
      %p240 = scmp.ne.s32.totalorder %s231, %s232
      %p241 = scmp.eq.s32.totalorder %s27, 0
      %p242 = por %p240, %p241
      %p243 = scmp.ne.s32.totalorder %s231, %s232
      %p244 = scmp.eq.s32.totalorder %s28, 1
      %p245 = por %p243, %p244
      %p247 = scmp.ne.s32.totalorder %s232, %s246
      %p248 = scmp.eq.s32.totalorder %s28, 0
      %p249 = por %p247, %p248
      %s251 = sadd.s32 %s250, 1
      %p254 = scmp.eq.s32.totalorder %s22, 1
      %p255 = scmp.ne.s32.totalorder %s250, %s252
      %p256 = scmp.eq.s32.totalorder %s22, 0
      %p257 = por %p255, %p256
      %p258 = scmp.ne.s32.totalorder %s250, %s252
      %p259 = scmp.eq.s32.totalorder %s27, 1
      %p260 = por %p258, %p259
      %p261 = scmp.ne.s32.totalorder %s252, %s253
      %p262 = scmp.eq.s32.totalorder %s27, 0
      %p263 = por %p261, %p262
      %p264 = scmp.ne.s32.totalorder %s252, %s253
      %p265 = scmp.eq.s32.totalorder %s28, 1
      %p266 = por %p264, %p265
      %p268 = scmp.ne.s32.totalorder %s253, %s267
      %p269 = scmp.eq.s32.totalorder %s28, 0
      %p270 = por %p268, %p269
      %s271 = ssub.s32 %s22, %s29
      %p272 = scmp.eq.s32.totalorder %s271, 0
      %s274 = sadd.s32 %s273, 1
      %s275 = scalar_select %p272, %s273, %s274
      %p278 = pneg %p272
      %p279 = scmp.eq.s32.totalorder %s22, 1
      %p280 = por %p278, %p279
      %p281 = scmp.ne.s32.totalorder %s273, %s276
      %p282 = scmp.eq.s32.totalorder %s22, 0
      %p283 = por %p281, %p282
      %p284 = scmp.ne.s32.totalorder %s273, %s276
      %p285 = scmp.eq.s32.totalorder %s27, 1
      %p286 = por %p284, %p285
      %p287 = scmp.ne.s32.totalorder %s276, %s277
      %p288 = scmp.eq.s32.totalorder %s27, 0
      %p289 = por %p287, %p288
      %p290 = scmp.ne.s32.totalorder %s276, %s277
      %p291 = scmp.eq.s32.totalorder %s28, 1
      %p292 = por %p290, %p291
      %p294 = scmp.ne.s32.totalorder %s277, %s293
      %p295 = scmp.eq.s32.totalorder %s28, 0
      %p296 = por %p294, %p295
      %p297 = scmp.le.s32.totalorder 1, %s22
      %p298 = scmp.lt.s32.totalorder %s22, 3
      %p299 = pnand %p297, %p298
      %p300 = pneg %p299
      // Predicated region
      $region9: #{tpu_custom_call.1} parent=5 // pred_check
        _
      $region10: #{tpu_custom_call.1} parent=5 // pred_check_branch
        %302 = sbr.rel (%p299) target = $region12
      $region11: #{tpu_custom_call.1} parent=5 // pred_region
        %s303 = ssub.s32 %s22, 1
        // Predicated region
        $region13: #{tpu_custom_call.1} parent=11 // pred_check
          %p304 = pneg %p95
        $region14: #{tpu_custom_call.1} parent=11 // pred_check_branch
          %306 = sbr.rel (%p304) target = $region16
        $region15: #{tpu_custom_call.1} parent=11 // pred_region
          _
        $region16: #{tpu_custom_call.1} parent=11 // pred_fallthru
          _
        // Predicated region
        $region17: #{tpu_custom_call.1} parent=11 // pred_check
          %p307 = pneg %p116
        $region18: #{tpu_custom_call.1} parent=11 // pred_check_branch
          %309 = sbr.rel (%p307) target = $region20
        $region19: #{tpu_custom_call.1} parent=11 // pred_region
          _
        $region20: #{tpu_custom_call.1} parent=11 // pred_fallthru
          _
        // Predicated region
        $region21: #{tpu_custom_call.1} parent=11 // pred_check
          %p310 = pneg %p137
        $region22: #{tpu_custom_call.1} parent=11 // pred_check_branch
          %312 = sbr.rel (%p310) target = $region24
        $region23: #{tpu_custom_call.1} parent=11 // pred_region
          _
        $region24: #{tpu_custom_call.1} parent=11 // pred_fallthru
          _
        // Predicated region
        $region25: #{tpu_custom_call.1} parent=11 // pred_check
          %p313 = pneg %p158
        $region26: #{tpu_custom_call.1} parent=11 // pred_check_branch
          %315 = sbr.rel (%p313) target = $region28
        $region27: #{tpu_custom_call.1} parent=11 // pred_region
          _
        $region28: #{tpu_custom_call.1} parent=11 // pred_fallthru
          _
        // Predicated region
        $region29: #{tpu_custom_call.1} parent=11 // pred_check
          %p316 = pneg %p179
        $region30: #{tpu_custom_call.1} parent=11 // pred_check_branch
          %318 = sbr.rel (%p316) target = $region32
        $region31: #{tpu_custom_call.1} parent=11 // pred_region
          %s320 = ssub.s32 8192, 8192
          %321 = vsyncadd [#allocation3], %s320
          %s322 = sshll.u32 [#allocation2], 4
          %s323 = int_to_ptr.vmem [resolvable:$true] %s322
          %328 = dma.hbm_to_vmem [thread:$0]  %s6, 8192, %s323, [#allocation3], 256, 256, 16
        $region32: #{tpu_custom_call.1} parent=11 // pred_fallthru
          _
        // Predicated region
        $region33: #{tpu_custom_call.1} parent=11 // pred_check
          %p329 = pneg %p200
        $region34: #{tpu_custom_call.1} parent=11 // pred_check_branch
          %331 = sbr.rel (%p329) target = $region36
        $region35: #{tpu_custom_call.1} parent=11 // pred_region
          %s333 = ssub.s32 8192, 8192
          %334 = vsyncadd [#allocation6], %s333
          %s335 = sshll.u32 [#allocation5], 4
          %s336 = int_to_ptr.vmem [resolvable:$true] %s335
          %341 = dma.hbm_to_vmem [thread:$0]  %s7, 8192, %s336, [#allocation6], 256, 256, 16
        $region36: #{tpu_custom_call.1} parent=11 // pred_fallthru
          _
        // Predicated region
        $region37: #{tpu_custom_call.1} parent=11 // pred_check
          %p342 = pneg %p221
        $region38: #{tpu_custom_call.1} parent=11 // pred_check_branch
          %344 = sbr.rel (%p342) target = $region40
        $region39: #{tpu_custom_call.1} parent=11 // pred_region
          _
        $region40: #{tpu_custom_call.1} parent=11 // pred_fallthru
          _
        // Predicated region
        $region41: #{tpu_custom_call.1} parent=11 // pred_check
          %p345 = pneg %p242
        $region42: #{tpu_custom_call.1} parent=11 // pred_check_branch
          %347 = sbr.rel (%p345) target = $region44
        $region43: #{tpu_custom_call.1} parent=11 // pred_region
          %s349 = ssub.s32 4096, 4096
          %350 = vsyncadd [#allocation6], %s349
          %s351 = sshll.u32 [#allocation7], 4
          %s352 = int_to_ptr.vmem [resolvable:$true] %s351
          %357 = dma.hbm_to_vmem [thread:$0]  %s9, 4096, %s352, [#allocation6], 64, 64, 4
        $region44: #{tpu_custom_call.1} parent=11 // pred_fallthru
          _
        // Predicated region
        $region45: #{tpu_custom_call.1} parent=11 // pred_check
          %p358 = pneg %p263
        $region46: #{tpu_custom_call.1} parent=11 // pred_check_branch
          %360 = sbr.rel (%p358) target = $region48
        $region47: #{tpu_custom_call.1} parent=11 // pred_region
          _
        $region48: #{tpu_custom_call.1} parent=11 // pred_fallthru
          _
      $region12: #{tpu_custom_call.1} parent=5 // pred_fallthru
        _
      %p361 = scmp.lt.s32.totalorder %s22, 2
      // Predicated region
      $region49: #{tpu_custom_call.1} parent=5 // pred_check
        %p362 = pneg %p361
      $region50: #{tpu_custom_call.1} parent=5 // pred_check_branch
        %364 = sbr.rel (%p362) target = $region52
      $region51: #{tpu_custom_call.1} parent=5 // pred_region
        // Predicated region
        $region53: #{tpu_custom_call.1} parent=51 // pred_check
          %p365 = pneg %p42
        $region54: #{tpu_custom_call.1} parent=51 // pred_check_branch
          %367 = sbr.rel (%p365) target = $region56
        $region55: #{tpu_custom_call.1} parent=51 // pred_region
          %s368 = smul.u32 8, %s22
          %p369 = scmp.lt.s32.totalorder %s368, 15
          %s370 = scalar_select %p369, %s368, 15
          %s371 = smul.addr %s370, 8
          %s372 = scalar_lea.vmem %s0, %s371
          %s373 = smul.u32 8, %s22
        $region56: #{tpu_custom_call.1} parent=51 // pred_fallthru
          _
        // Predicated region
        $region57: #{tpu_custom_call.1} parent=51 // pred_check
          %p374 = pneg %p68
        $region58: #{tpu_custom_call.1} parent=51 // pred_check_branch
          %376 = sbr.rel (%p374) target = $region60
        $region59: #{tpu_custom_call.1} parent=51 // pred_region
          %p377 = scmp.lt.s32.totalorder %s22, 1
          %s378 = scalar_select %p377, %s22, 1
          %s379 = smul.addr %s378, 8
          %s380 = scalar_lea.vmem %s1, %s379
        $region60: #{tpu_custom_call.1} parent=51 // pred_fallthru
          _
      $region52: #{tpu_custom_call.1} parent=5 // pred_fallthru
        _
      %p381 = scmp.le.s32.totalorder 1, %s22
      %p382 = scmp.lt.s32.totalorder %s22, 3
      %p383 = pnand %p381, %p382
      %p384 = pneg %p383
      // Predicated region
      $region61: #{tpu_custom_call.1} parent=5 // pred_check
        _
      $region62: #{tpu_custom_call.1} parent=5 // pred_check_branch
        %386 = sbr.rel (%p383) target = $region64
      $region63: #{tpu_custom_call.1} parent=5 // pred_region
        %s387 = ssub.s32 %s22, 1
        // Predicated region
        $region65: #{tpu_custom_call.1} parent=63 // pred_check
          %p388 = pneg %p179
        $region66: #{tpu_custom_call.1} parent=63 // pred_check_branch
          %390 = sbr.rel (%p388) target = $region68
        $region67: #{tpu_custom_call.1} parent=63 // pred_region
          %391 = dma.done [#allocation3], 8192
        $region68: #{tpu_custom_call.1} parent=63 // pred_fallthru
          _
        // Predicated region
        $region69: #{tpu_custom_call.1} parent=63 // pred_check
          %p392 = pneg %p200
        $region70: #{tpu_custom_call.1} parent=63 // pred_check_branch
          %394 = sbr.rel (%p392) target = $region72
        $region71: #{tpu_custom_call.1} parent=63 // pred_region
          %395 = dma.done [#allocation6], 8192
        $region72: #{tpu_custom_call.1} parent=63 // pred_fallthru
          _
        // Predicated region
        $region73: #{tpu_custom_call.1} parent=63 // pred_check
          %p396 = pneg %p242
        $region74: #{tpu_custom_call.1} parent=63 // pred_check_branch
          %398 = sbr.rel (%p396) target = $region76
        $region75: #{tpu_custom_call.1} parent=63 // pred_region
          %399 = dma.done [#allocation6], 4096
        $region76: #{tpu_custom_call.1} parent=63 // pred_fallthru
          _
        %s400 = smul.u32 8, %s27
        %p401 = scmp.lt.s32.totalorder %s400, 15
        %s402 = scalar_select %p401, %s400, 15
        %s403 = smul.addr %s402, 8
        %s404 = scalar_lea.vmem %s0, %s403
        %p405 = pneg %p48
        %p406 = pneg %p45
        %p407 = scmp.lt.s32.totalorder %s27, 1
        %s408 = scalar_select %p407, %s27, 1
        %s409 = smul.addr %s408, 8
        %s410 = scalar_lea.vmem %s1, %s409
        %p411 = pneg %p74
        %p412 = pneg %p71
        %p413 = pneg %p95
        %p414 = pneg %p92
        %p415 = pneg %p116
        %p416 = pneg %p113
        %p417 = pneg %p137
        %p418 = pneg %p134
        %p419 = pneg %p158
        %p420 = pneg %p155
        %p421 = pneg %p179
        %p422 = pneg %p176
        %p423 = pneg %p200
        %p424 = pneg %p197
        %p425 = pneg %p221
        %p426 = pneg %p218
        %p427 = pneg %p242
        %p428 = pneg %p239
        %p429 = pneg %p263
        %p430 = pneg %p260
        %p431 = pneg %p289
        %p432 = pneg %p286
        %s433 = sand.u32 %s276, 1
        %s434 = scalar_lea.sflag [#allocation4], %s433
        %s435 = sand.u32 %s276, 1
        %s436 = smul.addr %s435, 8
        %s437 = scalar_lea.vmem [#allocation8], %s436
        %s438 = smul.u32 8, %s27
        %p439 = scmp.lt.s32.totalorder %s438, 15
        %s440 = scalar_select %p439, %s438, 15
        %s441 = smul.addr %s440, 8
        %s442 = scalar_lea.vmem %s0, %s441
        %s443 = smul.u32 8, %s27
        %p444 = scmp.lt.s32.totalorder %s27, 1
        %s445 = scalar_select %p444, %s27, 1
        %s446 = smul.addr %s445, 8
        %s447 = scalar_lea.vmem %s1, %s446
        %v449 = vld [vmem:[%s442] sm:$0xff]
        %v450 = vld [vmem:[%s442 + $0x8] sm:$0xff]
        %v451 = vld [vmem:[%s442 + $0x10] sm:$0xff]
        %v452 = vld [vmem:[%s442 + $0x18] sm:$0xff]
        %v453 = vld [vmem:[%s442 + $0x20] sm:$0xff]
        %v454 = vld [vmem:[%s442 + $0x28] sm:$0xff]
        %v455 = vld [vmem:[%s442 + $0x30] sm:$0xff]
        %v456 = vld [vmem:[%s442 + $0x38] sm:$0xff]
        %v457 = vld [vmem:[%s447] sm:$0xff]
        %v458 = vld [vmem:[%s2] sm:$0x7]
        %v459 = vld [vmem:[%s3] sm:$0x1]
        %461 = vset.pattern.permute.xlu0 0
        %462 = vperm.xlu0 %461, %v457
        %v463 = vpop.permute.xlu0 %462
        %v465 = vlaneseq
        %v466 = vshrl.u32 %v465, 7
        %v467 = vsub.s32 0, %v466
        %v468 = vrot.slane %v458, %v467
        %v469 = vmul.f32 %v463, %v468
        %470 = vset.pattern.permute.xlu0 1
        %471 = vperm.xlu0 %470, %v457
        %v472 = vpop.permute.xlu0 %471
        %v474 = vlaneseq
        %v475 = vshrl.u32 %v474, 7
        %v476 = vsub.s32 1, %v475
        %v477 = vrot.slane %v458, %v476
        %v478 = vmul.f32 %v472, %v477
        %v479 = vadd.f32 %v469, %v478
        %480 = vset.pattern.permute.xlu0 2
        %481 = vperm.xlu0 %480, %v457
        %v482 = vpop.permute.xlu0 %481
        %v484 = vlaneseq
        %v485 = vshrl.u32 %v484, 7
        %v486 = vsub.s32 2, %v485
        %v487 = vrot.slane %v458, %v486
        %v488 = vmul.f32 %v482, %v487
        %v489 = vadd.f32 %v479, %v488
        %v491 = vlaneseq
        %v492 = vshrl.u32 %v491, 7
        %v493 = vsub.s32 0, %v492
        %v494 = vrot.slane %v459, %v493
        %v496 = vsub.f32 %v494, %v489
        %498 = vset.pattern.permute.xlu0 0
        %499 = vperm.xlu0 %498, %v449
        %v500 = vpop.permute.xlu0 %499
        %503 = vset.pattern.permute.xlu0 0
        %504 = vperm.xlu0 %503, %v450
        %v505 = vpop.permute.xlu0 %504
        %508 = vset.pattern.permute.xlu0 0
        %509 = vperm.xlu0 %508, %v451
        %v510 = vpop.permute.xlu0 %509
        %513 = vset.pattern.permute.xlu0 0
        %514 = vperm.xlu0 %513, %v452
        %v515 = vpop.permute.xlu0 %514
        %518 = vset.pattern.permute.xlu0 0
        %519 = vperm.xlu0 %518, %v453
        %v520 = vpop.permute.xlu0 %519
        %523 = vset.pattern.permute.xlu0 0
        %524 = vperm.xlu0 %523, %v454
        %v525 = vpop.permute.xlu0 %524
        %528 = vset.pattern.permute.xlu0 0
        %529 = vperm.xlu0 %528, %v455
        %v530 = vpop.permute.xlu0 %529
        %533 = vset.pattern.permute.xlu0 0
        %534 = vperm.xlu0 %533, %v456
        %v535 = vpop.permute.xlu0 %534
        %v537 = vmul.f32 %v500, %v468
        %v538 = vmul.f32 %v505, %v468
        %v539 = vmul.f32 %v510, %v468
        %v540 = vmul.f32 %v515, %v468
        %v541 = vmul.f32 %v520, %v468
        %v542 = vmul.f32 %v525, %v468
        %v543 = vmul.f32 %v530, %v468
        %v544 = vmul.f32 %v535, %v468
        %545 = vset.pattern.permute.xlu0 1
        %546 = vperm.xlu0 %545, %v449
        %v547 = vpop.permute.xlu0 %546
        %549 = vset.pattern.permute.xlu0 1
        %550 = vperm.xlu0 %549, %v450
        %v551 = vpop.permute.xlu0 %550
        %553 = vset.pattern.permute.xlu0 1
        %554 = vperm.xlu0 %553, %v451
        %v555 = vpop.permute.xlu0 %554
        %557 = vset.pattern.permute.xlu0 1
        %558 = vperm.xlu0 %557, %v452
        %v559 = vpop.permute.xlu0 %558
        %561 = vset.pattern.permute.xlu0 1
        %562 = vperm.xlu0 %561, %v453
        %v563 = vpop.permute.xlu0 %562
        %565 = vset.pattern.permute.xlu0 1
        %566 = vperm.xlu0 %565, %v454
        %v567 = vpop.permute.xlu0 %566
        %569 = vset.pattern.permute.xlu0 1
        %570 = vperm.xlu0 %569, %v455
        %v571 = vpop.permute.xlu0 %570
        %573 = vset.pattern.permute.xlu0 1
        %574 = vperm.xlu0 %573, %v456
        %v575 = vpop.permute.xlu0 %574
        %v577 = vmul.f32 %v547, %v477
        %v578 = vmul.f32 %v551, %v477
        %v579 = vmul.f32 %v555, %v477
        %v580 = vmul.f32 %v559, %v477
        %v581 = vmul.f32 %v563, %v477
        %v582 = vmul.f32 %v567, %v477
        %v583 = vmul.f32 %v571, %v477
        %v584 = vmul.f32 %v575, %v477
        %v585 = vadd.f32 %v537, %v577
        %v586 = vadd.f32 %v538, %v578
        %v587 = vadd.f32 %v539, %v579
        %v588 = vadd.f32 %v540, %v580
        %v589 = vadd.f32 %v541, %v581
        %v590 = vadd.f32 %v542, %v582
        %v591 = vadd.f32 %v543, %v583
        %v592 = vadd.f32 %v544, %v584
        %593 = vset.pattern.permute.xlu0 2
        %594 = vperm.xlu0 %593, %v449
        %v595 = vpop.permute.xlu0 %594
        %597 = vset.pattern.permute.xlu0 2
        %598 = vperm.xlu0 %597, %v450
        %v599 = vpop.permute.xlu0 %598
        %601 = vset.pattern.permute.xlu0 2
        %602 = vperm.xlu0 %601, %v451
        %v603 = vpop.permute.xlu0 %602
        %605 = vset.pattern.permute.xlu0 2
        %606 = vperm.xlu0 %605, %v452
        %v607 = vpop.permute.xlu0 %606
        %609 = vset.pattern.permute.xlu0 2
        %610 = vperm.xlu0 %609, %v453
        %v611 = vpop.permute.xlu0 %610
        %613 = vset.pattern.permute.xlu0 2
        %614 = vperm.xlu0 %613, %v454
        %v615 = vpop.permute.xlu0 %614
        %617 = vset.pattern.permute.xlu0 2
        %618 = vperm.xlu0 %617, %v455
        %v619 = vpop.permute.xlu0 %618
        %621 = vset.pattern.permute.xlu0 2
        %622 = vperm.xlu0 %621, %v456
        %v623 = vpop.permute.xlu0 %622
        %v625 = vmul.f32 %v595, %v487
        %v626 = vmul.f32 %v599, %v487
        %v627 = vmul.f32 %v603, %v487
        %v628 = vmul.f32 %v607, %v487
        %v629 = vmul.f32 %v611, %v487
        %v630 = vmul.f32 %v615, %v487
        %v631 = vmul.f32 %v619, %v487
        %v632 = vmul.f32 %v623, %v487
        %v633 = vadd.f32 %v585, %v625
        %v634 = vadd.f32 %v586, %v626
        %v635 = vadd.f32 %v587, %v627
        %v636 = vadd.f32 %v588, %v628
        %v637 = vadd.f32 %v589, %v629
        %v638 = vadd.f32 %v590, %v630
        %v639 = vadd.f32 %v591, %v631
        %v640 = vadd.f32 %v592, %v632
        %v642 = vcombine.high %v496, %v496
        %v644 = vunpack.c.l.s4 1966171168
        %v645 = vunpack.c.0.s8 %v644
        %v646 = vlaneseq
        %v647 = vshrl.u32 %v646, 7
        %v648 = vsub.s32 %v645, %v647
        %v649 = vrot.slane %v496, %v648
        %v651 = vunpack.c.l.s4 1966171168
        %v652 = vunpack.c.0.s8 %v651
        %v653 = vlaneseq
        %v654 = vshrl.u32 %v653, 7
        %v655 = vsub.s32 %v652, %v654
        %v656 = vrot.slane %v642, %v655
        %v657 = vcombine.high %v649, %v649
        %v658 = vcombine.high %v656, %v656
        %v660 = vunpack.c.l.s4 1966171168
        %v661 = vunpack.c.0.s8 %v660
        %v662 = vlaneseq
        %v663 = vshrl.u32 %v662, 7
        %v664 = vsub.s32 %v661, %v663
        %v665 = vrot.slane %v649, %v664
        %v667 = vunpack.c.l.s4 1966171168
        %v668 = vunpack.c.0.s8 %v667
        %v669 = vlaneseq
        %v670 = vshrl.u32 %v669, 7
        %v671 = vsub.s32 %v668, %v670
        %v672 = vrot.slane %v656, %v671
        %v674 = vunpack.c.l.s4 1966171168
        %v675 = vunpack.c.0.s8 %v674
        %v676 = vlaneseq
        %v677 = vshrl.u32 %v676, 7
        %v678 = vsub.s32 %v675, %v677
        %v679 = vrot.slane %v657, %v678
        %v681 = vunpack.c.l.s4 1966171168
        %v682 = vunpack.c.0.s8 %v681
        %v683 = vlaneseq
        %v684 = vshrl.u32 %v683, 7
        %v685 = vsub.s32 %v682, %v684
        %v686 = vrot.slane %v658, %v685
        %v687 = vcombine.high %v665, %v665
        %v688 = vcombine.high %v672, %v672
        %v689 = vcombine.high %v679, %v679
        %v690 = vcombine.high %v686, %v686
        %v691 = vlaneseq
        %v692 = vshrl.u32 %v691, 7
        %v693 = vsub.s32 0, %v692
        %v694 = vrot.slane %v665, %v693
        %v695 = vlaneseq
        %v696 = vshrl.u32 %v695, 7
        %v697 = vsub.s32 0, %v696
        %v698 = vrot.slane %v679, %v697
        %v699 = vlaneseq
        %v700 = vshrl.u32 %v699, 7
        %v701 = vsub.s32 0, %v700
        %v702 = vrot.slane %v687, %v701
        %v703 = vlaneseq
        %v704 = vshrl.u32 %v703, 7
        %v705 = vsub.s32 0, %v704
        %v706 = vrot.slane %v689, %v705
        %v707 = vlaneseq
        %v708 = vshrl.u32 %v707, 7
        %v709 = vsub.s32 0, %v708
        %v710 = vrot.slane %v672, %v709
        %v711 = vlaneseq
        %v712 = vshrl.u32 %v711, 7
        %v713 = vsub.s32 0, %v712
        %v714 = vrot.slane %v686, %v713
        %v715 = vlaneseq
        %v716 = vshrl.u32 %v715, 7
        %v717 = vsub.s32 0, %v716
        %v718 = vrot.slane %v688, %v717
        %v719 = vlaneseq
        %v720 = vshrl.u32 %v719, 7
        %v721 = vsub.s32 0, %v720
        %v722 = vrot.slane %v690, %v721
        %v731 = vadd.f32 %v633, %v694
        %v732 = vadd.f32 %v634, %v698
        %v733 = vadd.f32 %v635, %v702
        %v734 = vadd.f32 %v636, %v706
        %v735 = vadd.f32 %v637, %v710
        %v736 = vadd.f32 %v638, %v714
        %v737 = vadd.f32 %v639, %v718
        %v738 = vadd.f32 %v640, %v722
        %v739 = vmax.f32 %v731, 0.0
        %v740 = vmax.f32 %v732, 0.0
        %v741 = vmax.f32 %v733, 0.0
        %v742 = vmax.f32 %v734, 0.0
        %v743 = vmax.f32 %v735, 0.0
        %v744 = vmax.f32 %v736, 0.0
        %v745 = vmax.f32 %v737, 0.0
        %v746 = vmax.f32 %v738, 0.0
        %v747 = vpack.c.bf16 %v740, %v739
        %v748 = vpack.c.bf16 %v742, %v741
        %v749 = vpack.c.bf16 %v744, %v743
        %v750 = vpack.c.bf16 %v746, %v745
        %v751 = vld [vmem:[%s4] sm:$0xff]
        %v752 = vld [vmem:[%s4 + $0x8] sm:$0xff]
        %v753 = vld [vmem:[%s4 + $0x10] sm:$0xff]
        %v754 = vld [vmem:[%s4 + $0x18] sm:$0xff]
        %v755 = vld [vmem:[%s4 + $0x20] sm:$0xff]
        %v756 = vld [vmem:[%s4 + $0x28] sm:$0xff]
        %v757 = vld [vmem:[%s4 + $0x30] sm:$0xff]
        %v758 = vld [vmem:[%s4 + $0x38] sm:$0xff]
        %v759 = vld [vmem:[%s4 + $0x40] sm:$0xff]
        %v760 = vld [vmem:[%s4 + $0x48] sm:$0xff]
        %v761 = vld [vmem:[%s4 + $0x50] sm:$0xff]
        %v762 = vld [vmem:[%s4 + $0x58] sm:$0xff]
        %v763 = vld [vmem:[%s4 + $0x60] sm:$0xff]
        %v764 = vld [vmem:[%s4 + $0x68] sm:$0xff]
        %v765 = vld [vmem:[%s4 + $0x70] sm:$0xff]
        %v766 = vld [vmem:[%s4 + $0x78] sm:$0xff]
        %v767 = vld [vmem:[%s5] sm:$0x3]
        %v769 = vlaneseq
        %v770 = vshrl.u32 %v769, 7
        %v771 = vsub.s32 0, %v770
        %v772 = vrot.slane %v767, %v771
        %v773 = vlaneseq
        %v774 = vshrl.u32 %v773, 7
        %v775 = vsub.s32 1, %v774
        %v776 = vrot.slane %v767, %v775
        %v795 = vunpack.c.l.b16 %v751
        %v796 = vunpack.c.h.b16 %v751
        %v797 = vunpack.c.l.b16 %v752
        %v798 = vunpack.c.h.b16 %v752
        %v799 = vunpack.c.l.b16 %v753
        %v800 = vunpack.c.h.b16 %v753
        %v801 = vunpack.c.l.b16 %v754
        %v802 = vunpack.c.h.b16 %v754
        %v803 = vunpack.c.l.b16 %v755
        %v804 = vunpack.c.h.b16 %v755
        %v805 = vunpack.c.l.b16 %v756
        %v806 = vunpack.c.h.b16 %v756
        %v807 = vunpack.c.l.b16 %v757
        %v808 = vunpack.c.h.b16 %v757
        %v809 = vunpack.c.l.b16 %v758
        %v810 = vunpack.c.h.b16 %v758
        %v811 = vunpack.c.l.b16 %v759
        %v812 = vunpack.c.h.b16 %v759
        %v813 = vunpack.c.l.b16 %v760
        %v814 = vunpack.c.h.b16 %v760
        %v815 = vunpack.c.l.b16 %v761
        %v816 = vunpack.c.h.b16 %v761
        %v817 = vunpack.c.l.b16 %v762
        %v818 = vunpack.c.h.b16 %v762
        %v819 = vunpack.c.l.b16 %v763
        %v820 = vunpack.c.h.b16 %v763
        %v821 = vunpack.c.l.b16 %v764
        %v822 = vunpack.c.h.b16 %v764
        %v823 = vunpack.c.l.b16 %v765
        %v824 = vunpack.c.h.b16 %v765
        %v825 = vunpack.c.l.b16 %v766
        %v826 = vunpack.c.h.b16 %v766
        %v827 = vpack.c.b16 %v797, %v795
        %v828 = vpack.c.b16 %v798, %v796
        %v829 = vpack.c.b16 %v801, %v799
        %v830 = vpack.c.b16 %v802, %v800
        %v831 = vpack.c.b16 %v805, %v803
        %v832 = vpack.c.b16 %v806, %v804
        %v833 = vpack.c.b16 %v809, %v807
        %v834 = vpack.c.b16 %v810, %v808
        %v835 = vpack.c.b16 %v813, %v811
        %v836 = vpack.c.b16 %v814, %v812
        %v837 = vpack.c.b16 %v817, %v815
        %v838 = vpack.c.b16 %v818, %v816
        %v839 = vpack.c.b16 %v821, %v819
        %v840 = vpack.c.b16 %v822, %v820
        %v841 = vpack.c.b16 %v825, %v823
        %v842 = vpack.c.b16 %v826, %v824
        %859 = vmatprep.subr.bf16.mxu0 %v828
        %860 = vmatpush1.bf16.msra.mxu0 %v827
        %861 = vmatprep.subr.bf16.mxu0 %v830
        %862 = vmatpush1.bf16.msra.mxu0 %v829
        %863 = vmatprep.subr.bf16.mxu0 %v832
        %864 = vmatpush1.bf16.msra.mxu0 %v831
        %865 = vmatprep.subr.bf16.mxu0 %v834
        %866 = vmatpush1.bf16.msra.mxu0 %v833
        %867 = vmatprep.subr.bf16.mxu0 %v836
        %868 = vmatpush1.bf16.msra.mxu0 %v835
        %869 = vmatprep.subr.bf16.mxu0 %v838
        %870 = vmatpush1.bf16.msra.mxu0 %v837
        %871 = vmatprep.subr.bf16.mxu0 %v840
        %872 = vmatpush1.bf16.msra.mxu0 %v839
        %873 = vmatprep.subr.bf16.mxu0 %v842
        %874 = vmatpush1.bf16.msra.mxu0 %v841
        %875 = vmatprep.subr.bf16.mxu0 0
        %876 = vmatpush1.bf16.msra.mxu0 0
        %877 = vmatprep.subr.bf16.mxu0 0
        %878 = vmatpush1.bf16.msra.mxu0 0
        %879 = vmatprep.subr.bf16.mxu0 0
        %880 = vmatpush1.bf16.msra.mxu0 0
        %881 = vmatprep.subr.bf16.mxu0 0
        %882 = vmatpush1.bf16.msra.mxu0 0
        %883 = vmatprep.subr.bf16.mxu0 0
        %884 = vmatpush1.bf16.msra.mxu0 0
        %885 = vmatprep.subr.bf16.mxu0 0
        %886 = vmatpush1.bf16.msra.mxu0 0
        %887 = vmatprep.subr.bf16.mxu0 0
        %888 = vmatpush1.bf16.msra.mxu0 0
        %889 = vmatprep.subr.bf16.mxu0 0
        %890 = vmatpush1.bf16.msra.mxu0 0
        %891 = vmatprep.mubr.bf16.mxu0 0
        %892 = vmatmul.mubr.bf16.gmra.mrb[0].mxu0 %v747
        %v893 = vpop.f32.mrb[0].mxu0
        %v894 = vadd.f32 %v772, %v893
        %v895 = vpop.f32.mrb[0].mxu0
        %v896 = vadd.f32 %v776, %v895
        %v897 = vpop.f32.mrb[0].mxu0
        %v898 = vadd.f32 %v772, %v897
        %v899 = vpop.f32.mrb[0].mxu0
        %v900 = vadd.f32 %v776, %v899
        %901 = vmatprep.mubr.bf16.mxu0 0
        %902 = vmatmul.mubr.bf16.gmra.mrb[0].mxu0 %v748
        %v903 = vpop.f32.mrb[0].mxu0
        %v904 = vadd.f32 %v772, %v903
        %v905 = vpop.f32.mrb[0].mxu0
        %v906 = vadd.f32 %v776, %v905
        %v907 = vpop.f32.mrb[0].mxu0
        %v908 = vadd.f32 %v772, %v907
        %v909 = vpop.f32.mrb[0].mxu0
        %v910 = vadd.f32 %v776, %v909
        %911 = vmatprep.mubr.bf16.mxu0 0
        %912 = vmatmul.mubr.bf16.gmra.mrb[0].mxu0 %v749
        %v913 = vpop.f32.mrb[0].mxu0
        %v914 = vadd.f32 %v772, %v913
        %v915 = vpop.f32.mrb[0].mxu0
        %v916 = vadd.f32 %v776, %v915
        %v917 = vpop.f32.mrb[0].mxu0
        %v918 = vadd.f32 %v772, %v917
        %v919 = vpop.f32.mrb[0].mxu0
        %v920 = vadd.f32 %v776, %v919
        %921 = vmatprep.mubr.bf16.mxu0 0
        %922 = vmatmul.mubr.bf16.gmra.mrb[0].mxu0 %v750
        %v923 = vpop.f32.mrb[0].mxu0
        %v924 = vadd.f32 %v772, %v923
        %v925 = vpop.f32.mrb[0].mxu0
        %v926 = vadd.f32 %v776, %v925
        %v927 = vpop.f32.mrb[0].mxu0
        %v928 = vadd.f32 %v772, %v927
        %v929 = vpop.f32.mrb[0].mxu0
        %v930 = vadd.f32 %v776, %v929
        %931 = vdwg.mxu0
        %v932 = vrot.slane %v894, 4
        %v933 = vmax.f32 %v894, %v932
        %v934 = vrot.slane %v933, 2
        %v935 = vmax.f32 %v933, %v934
        %v936 = vrot.slane %v935, 1
        %v937 = vmax.f32 %v935, %v936
        %v938 = vrot.slane %v896, 4
        %v939 = vmax.f32 %v896, %v938
        %v940 = vrot.slane %v939, 2
        %v941 = vmax.f32 %v939, %v940
        %v942 = vrot.slane %v941, 1
        %v943 = vmax.f32 %v941, %v942
        %v944 = vrot.slane %v898, 4
        %v945 = vmax.f32 %v898, %v944
        %v946 = vrot.slane %v945, 2
        %v947 = vmax.f32 %v945, %v946
        %v948 = vrot.slane %v947, 1
        %v949 = vmax.f32 %v947, %v948
        %v950 = vrot.slane %v900, 4
        %v951 = vmax.f32 %v900, %v950
        %v952 = vrot.slane %v951, 2
        %v953 = vmax.f32 %v951, %v952
        %v954 = vrot.slane %v953, 1
        %v955 = vmax.f32 %v953, %v954
        %v956 = vrot.slane %v904, 4
        %v957 = vmax.f32 %v904, %v956
        %v958 = vrot.slane %v957, 2
        %v959 = vmax.f32 %v957, %v958
        %v960 = vrot.slane %v959, 1
        %v961 = vmax.f32 %v959, %v960
        %v962 = vrot.slane %v906, 4
        %v963 = vmax.f32 %v906, %v962
        %v964 = vrot.slane %v963, 2
        %v965 = vmax.f32 %v963, %v964
        %v966 = vrot.slane %v965, 1
        %v967 = vmax.f32 %v965, %v966
        %v968 = vrot.slane %v908, 4
        %v969 = vmax.f32 %v908, %v968
        %v970 = vrot.slane %v969, 2
        %v971 = vmax.f32 %v969, %v970
        %v972 = vrot.slane %v971, 1
        %v973 = vmax.f32 %v971, %v972
        %v974 = vrot.slane %v910, 4
        %v975 = vmax.f32 %v910, %v974
        %v976 = vrot.slane %v975, 2
        %v977 = vmax.f32 %v975, %v976
        %v978 = vrot.slane %v977, 1
        %v979 = vmax.f32 %v977, %v978
        %v980 = vrot.slane %v914, 4
        %v981 = vmax.f32 %v914, %v980
        %v982 = vrot.slane %v981, 2
        %v983 = vmax.f32 %v981, %v982
        %v984 = vrot.slane %v983, 1
        %v985 = vmax.f32 %v983, %v984
        %v986 = vrot.slane %v916, 4
        %v987 = vmax.f32 %v916, %v986
        %v988 = vrot.slane %v987, 2
        %v989 = vmax.f32 %v987, %v988
        %v990 = vrot.slane %v989, 1
        %v991 = vmax.f32 %v989, %v990
        %v992 = vrot.slane %v918, 4
        %v993 = vmax.f32 %v918, %v992
        %v994 = vrot.slane %v993, 2
        %v995 = vmax.f32 %v993, %v994
        %v996 = vrot.slane %v995, 1
        %v997 = vmax.f32 %v995, %v996
        %v998 = vrot.slane %v920, 4
        %v999 = vmax.f32 %v920, %v998
        %v1000 = vrot.slane %v999, 2
        %v1001 = vmax.f32 %v999, %v1000
        %v1002 = vrot.slane %v1001, 1
        %v1003 = vmax.f32 %v1001, %v1002
        %v1004 = vrot.slane %v924, 4
        %v1005 = vmax.f32 %v924, %v1004
        %v1006 = vrot.slane %v1005, 2
        %v1007 = vmax.f32 %v1005, %v1006
        %v1008 = vrot.slane %v1007, 1
        %v1009 = vmax.f32 %v1007, %v1008
        %v1010 = vrot.slane %v926, 4
        %v1011 = vmax.f32 %v926, %v1010
        %v1012 = vrot.slane %v1011, 2
        %v1013 = vmax.f32 %v1011, %v1012
        %v1014 = vrot.slane %v1013, 1
        %v1015 = vmax.f32 %v1013, %v1014
        %v1016 = vrot.slane %v928, 4
        %v1017 = vmax.f32 %v928, %v1016
        %v1018 = vrot.slane %v1017, 2
        %v1019 = vmax.f32 %v1017, %v1018
        %v1020 = vrot.slane %v1019, 1
        %v1021 = vmax.f32 %v1019, %v1020
        %v1022 = vrot.slane %v930, 4
        %v1023 = vmax.f32 %v930, %v1022
        %v1024 = vrot.slane %v1023, 2
        %v1025 = vmax.f32 %v1023, %v1024
        %v1026 = vrot.slane %v1025, 1
        %v1027 = vmax.f32 %v1025, %v1026
        %v1028 = vpack.c.bf16 %v937, %v937
        %v1029 = vpack.c.bf16 %v943, %v943
        %v1030 = vpack.c.bf16 %v949, %v949
        %v1031 = vpack.c.bf16 %v955, %v955
        %v1032 = vpack.c.bf16 %v961, %v961
        %v1033 = vpack.c.bf16 %v967, %v967
        %v1034 = vpack.c.bf16 %v973, %v973
        %v1035 = vpack.c.bf16 %v979, %v979
        %v1036 = vpack.c.bf16 %v985, %v985
        %v1037 = vpack.c.bf16 %v991, %v991
        %v1038 = vpack.c.bf16 %v997, %v997
        %v1039 = vpack.c.bf16 %v1003, %v1003
        %v1040 = vpack.c.bf16 %v1009, %v1009
        %v1041 = vpack.c.bf16 %v1015, %v1015
        %v1042 = vpack.c.bf16 %v1021, %v1021
        %v1043 = vpack.c.bf16 %v1027, %v1027
        %v1044 = vld [vmem:[#allocation5] sm:$0xff]
        %v1045 = vld [vmem:[#allocation5 + $0x8] sm:$0xff]
        %v1046 = vld [vmem:[#allocation5 + $0x10] sm:$0xff]
        %v1047 = vld [vmem:[#allocation5 + $0x18] sm:$0xff]
        %v1048 = vld [vmem:[#allocation5 + $0x20] sm:$0xff]
        %v1049 = vld [vmem:[#allocation5 + $0x28] sm:$0xff]
        %v1050 = vld [vmem:[#allocation5 + $0x30] sm:$0xff]
        %v1051 = vld [vmem:[#allocation5 + $0x38] sm:$0xff]
        %v1052 = vld [vmem:[#allocation5 + $0x40] sm:$0xff]
        %v1053 = vld [vmem:[#allocation5 + $0x48] sm:$0xff]
        %v1054 = vld [vmem:[#allocation5 + $0x50] sm:$0xff]
        %v1055 = vld [vmem:[#allocation5 + $0x58] sm:$0xff]
        %v1056 = vld [vmem:[#allocation5 + $0x60] sm:$0xff]
        %v1057 = vld [vmem:[#allocation5 + $0x68] sm:$0xff]
        %v1058 = vld [vmem:[#allocation5 + $0x70] sm:$0xff]
        %v1059 = vld [vmem:[#allocation5 + $0x78] sm:$0xff]
        %v1060 = vld [vmem:[#allocation5 + $0x80] sm:$0xff]
        %v1061 = vld [vmem:[#allocation5 + $0x88] sm:$0xff]
        %v1062 = vld [vmem:[#allocation5 + $0x90] sm:$0xff]
        %v1063 = vld [vmem:[#allocation5 + $0x98] sm:$0xff]
        %v1064 = vld [vmem:[#allocation5 + $0xa0] sm:$0xff]
        %v1065 = vld [vmem:[#allocation5 + $0xa8] sm:$0xff]
        %v1066 = vld [vmem:[#allocation5 + $0xb0] sm:$0xff]
        %v1067 = vld [vmem:[#allocation5 + $0xb8] sm:$0xff]
        %v1068 = vld [vmem:[#allocation5 + $0xc0] sm:$0xff]
        %v1069 = vld [vmem:[#allocation5 + $0xc8] sm:$0xff]
        %v1070 = vld [vmem:[#allocation5 + $0xd0] sm:$0xff]
        %v1071 = vld [vmem:[#allocation5 + $0xd8] sm:$0xff]
        %v1072 = vld [vmem:[#allocation5 + $0xe0] sm:$0xff]
        %v1073 = vld [vmem:[#allocation5 + $0xe8] sm:$0xff]
        %v1074 = vld [vmem:[#allocation5 + $0xf0] sm:$0xff]
        %v1075 = vld [vmem:[#allocation5 + $0xf8] sm:$0xff]
        %v1076 = vld [vmem:[#allocation5 + $0x100] sm:$0xff]
        %v1077 = vld [vmem:[#allocation5 + $0x108] sm:$0xff]
        %v1078 = vld [vmem:[#allocation5 + $0x110] sm:$0xff]
        %v1079 = vld [vmem:[#allocation5 + $0x118] sm:$0xff]
        %v1080 = vld [vmem:[#allocation5 + $0x120] sm:$0xff]
        %v1081 = vld [vmem:[#allocation5 + $0x128] sm:$0xff]
        %v1082 = vld [vmem:[#allocation5 + $0x130] sm:$0xff]
        %v1083 = vld [vmem:[#allocation5 + $0x138] sm:$0xff]
        %v1084 = vld [vmem:[#allocation5 + $0x140] sm:$0xff]
        %v1085 = vld [vmem:[#allocation5 + $0x148] sm:$0xff]
        %v1086 = vld [vmem:[#allocation5 + $0x150] sm:$0xff]
        %v1087 = vld [vmem:[#allocation5 + $0x158] sm:$0xff]
        %v1088 = vld [vmem:[#allocation5 + $0x160] sm:$0xff]
        %v1089 = vld [vmem:[#allocation5 + $0x168] sm:$0xff]
        %v1090 = vld [vmem:[#allocation5 + $0x170] sm:$0xff]
        %v1091 = vld [vmem:[#allocation5 + $0x178] sm:$0xff]
        %v1092 = vld [vmem:[#allocation5 + $0x180] sm:$0xff]
        %v1093 = vld [vmem:[#allocation5 + $0x188] sm:$0xff]
        %v1094 = vld [vmem:[#allocation5 + $0x190] sm:$0xff]
        %v1095 = vld [vmem:[#allocation5 + $0x198] sm:$0xff]
        %v1096 = vld [vmem:[#allocation5 + $0x1a0] sm:$0xff]
        %v1097 = vld [vmem:[#allocation5 + $0x1a8] sm:$0xff]
        %v1098 = vld [vmem:[#allocation5 + $0x1b0] sm:$0xff]
        %v1099 = vld [vmem:[#allocation5 + $0x1b8] sm:$0xff]
        %v1100 = vld [vmem:[#allocation5 + $0x1c0] sm:$0xff]
        %v1101 = vld [vmem:[#allocation5 + $0x1c8] sm:$0xff]
        %v1102 = vld [vmem:[#allocation5 + $0x1d0] sm:$0xff]
        %v1103 = vld [vmem:[#allocation5 + $0x1d8] sm:$0xff]
        %v1104 = vld [vmem:[#allocation5 + $0x1e0] sm:$0xff]
        %v1105 = vld [vmem:[#allocation5 + $0x1e8] sm:$0xff]
        %v1106 = vld [vmem:[#allocation5 + $0x1f0] sm:$0xff]
        %v1107 = vld [vmem:[#allocation5 + $0x1f8] sm:$0xff]
        %v1124 = vunpack.c.l.b16 %v1028
        %v1125 = vunpack.c.l.b16 %v1029
        %v1126 = vunpack.c.l.b16 %v1030
        %v1127 = vunpack.c.l.b16 %v1031
        %v1128 = vunpack.c.l.b16 %v1032
        %v1129 = vunpack.c.l.b16 %v1033
        %v1130 = vunpack.c.l.b16 %v1034
        %v1131 = vunpack.c.l.b16 %v1035
        %v1132 = vunpack.c.l.b16 %v1036
        %v1133 = vunpack.c.l.b16 %v1037
        %v1134 = vunpack.c.l.b16 %v1038
        %v1135 = vunpack.c.l.b16 %v1039
        %v1136 = vunpack.c.l.b16 %v1040
        %v1137 = vunpack.c.l.b16 %v1041
        %v1138 = vunpack.c.l.b16 %v1042
        %v1139 = vunpack.c.l.b16 %v1043
        %vm1140 = vcmask 1041409
        %v1141 = vsel %vm1140, %v1126, %v1124
        %vm1142 = vcmask 1042434
        %v1143 = vsel %vm1142, %v1128, %v1141
        %vm1144 = vcmask 1043459
        %v1145 = vsel %vm1144, %v1130, %v1143
        %vm1146 = vcmask 1044484
        %v1147 = vsel %vm1146, %v1132, %v1145
        %vm1148 = vcmask 1045509
        %v1149 = vsel %vm1148, %v1134, %v1147
        %vm1150 = vcmask 1046534
        %v1151 = vsel %vm1150, %v1136, %v1149
        %vm1152 = vcmask 1047559
        %v1153 = vsel %vm1152, %v1138, %v1151
        %v1154 = vsel %vm1140, %v1127, %v1125
        %v1155 = vsel %vm1142, %v1129, %v1154
        %v1156 = vsel %vm1144, %v1131, %v1155
        %v1157 = vsel %vm1146, %v1133, %v1156
        %v1158 = vsel %vm1148, %v1135, %v1157
        %v1159 = vsel %vm1150, %v1137, %v1158
        %v1160 = vsel %vm1152, %v1139, %v1159
        %v1161 = vpack.c.b16 %v1153, %v1153
        %v1162 = vpack.c.b16 %v1160, %v1160
        %v1229 = vunpack.c.l.b16 %v1044
        %v1230 = vunpack.c.h.b16 %v1044
        %v1231 = vunpack.c.l.b16 %v1045
        %v1232 = vunpack.c.h.b16 %v1045
        %v1233 = vunpack.c.l.b16 %v1046
        %v1234 = vunpack.c.h.b16 %v1046
        %v1235 = vunpack.c.l.b16 %v1047
        %v1236 = vunpack.c.h.b16 %v1047
        %v1237 = vunpack.c.l.b16 %v1048
        %v1238 = vunpack.c.h.b16 %v1048
        %v1239 = vunpack.c.l.b16 %v1049
        %v1240 = vunpack.c.h.b16 %v1049
        %v1241 = vunpack.c.l.b16 %v1050
        %v1242 = vunpack.c.h.b16 %v1050
        %v1243 = vunpack.c.l.b16 %v1051
        %v1244 = vunpack.c.h.b16 %v1051
        %v1245 = vunpack.c.l.b16 %v1052
        %v1246 = vunpack.c.h.b16 %v1052
        %v1247 = vunpack.c.l.b16 %v1053
        %v1248 = vunpack.c.h.b16 %v1053
        %v1249 = vunpack.c.l.b16 %v1054
        %v1250 = vunpack.c.h.b16 %v1054
        %v1251 = vunpack.c.l.b16 %v1055
        %v1252 = vunpack.c.h.b16 %v1055
        %v1253 = vunpack.c.l.b16 %v1056
        %v1254 = vunpack.c.h.b16 %v1056
        %v1255 = vunpack.c.l.b16 %v1057
        %v1256 = vunpack.c.h.b16 %v1057
        %v1257 = vunpack.c.l.b16 %v1058
        %v1258 = vunpack.c.h.b16 %v1058
        %v1259 = vunpack.c.l.b16 %v1059
        %v1260 = vunpack.c.h.b16 %v1059
        %v1261 = vunpack.c.l.b16 %v1060
        %v1262 = vunpack.c.h.b16 %v1060
        %v1263 = vunpack.c.l.b16 %v1061
        %v1264 = vunpack.c.h.b16 %v1061
        %v1265 = vunpack.c.l.b16 %v1062
        %v1266 = vunpack.c.h.b16 %v1062
        %v1267 = vunpack.c.l.b16 %v1063
        %v1268 = vunpack.c.h.b16 %v1063
        %v1269 = vunpack.c.l.b16 %v1064
        %v1270 = vunpack.c.h.b16 %v1064
        %v1271 = vunpack.c.l.b16 %v1065
        %v1272 = vunpack.c.h.b16 %v1065
        %v1273 = vunpack.c.l.b16 %v1066
        %v1274 = vunpack.c.h.b16 %v1066
        %v1275 = vunpack.c.l.b16 %v1067
        %v1276 = vunpack.c.h.b16 %v1067
        %v1277 = vunpack.c.l.b16 %v1068
        %v1278 = vunpack.c.h.b16 %v1068
        %v1279 = vunpack.c.l.b16 %v1069
        %v1280 = vunpack.c.h.b16 %v1069
        %v1281 = vunpack.c.l.b16 %v1070
        %v1282 = vunpack.c.h.b16 %v1070
        %v1283 = vunpack.c.l.b16 %v1071
        %v1284 = vunpack.c.h.b16 %v1071
        %v1285 = vunpack.c.l.b16 %v1072
        %v1286 = vunpack.c.h.b16 %v1072
        %v1287 = vunpack.c.l.b16 %v1073
        %v1288 = vunpack.c.h.b16 %v1073
        %v1289 = vunpack.c.l.b16 %v1074
        %v1290 = vunpack.c.h.b16 %v1074
        %v1291 = vunpack.c.l.b16 %v1075
        %v1292 = vunpack.c.h.b16 %v1075
        %v1293 = vunpack.c.l.b16 %v1076
        %v1294 = vunpack.c.h.b16 %v1076
        %v1295 = vunpack.c.l.b16 %v1077
        %v1296 = vunpack.c.h.b16 %v1077
        %v1297 = vunpack.c.l.b16 %v1078
        %v1298 = vunpack.c.h.b16 %v1078
        %v1299 = vunpack.c.l.b16 %v1079
        %v1300 = vunpack.c.h.b16 %v1079
        %v1301 = vunpack.c.l.b16 %v1080
        %v1302 = vunpack.c.h.b16 %v1080
        %v1303 = vunpack.c.l.b16 %v1081
        %v1304 = vunpack.c.h.b16 %v1081
        %v1305 = vunpack.c.l.b16 %v1082
        %v1306 = vunpack.c.h.b16 %v1082
        %v1307 = vunpack.c.l.b16 %v1083
        %v1308 = vunpack.c.h.b16 %v1083
        %v1309 = vunpack.c.l.b16 %v1084
        %v1310 = vunpack.c.h.b16 %v1084
        %v1311 = vunpack.c.l.b16 %v1085
        %v1312 = vunpack.c.h.b16 %v1085
        %v1313 = vunpack.c.l.b16 %v1086
        %v1314 = vunpack.c.h.b16 %v1086
        %v1315 = vunpack.c.l.b16 %v1087
        %v1316 = vunpack.c.h.b16 %v1087
        %v1317 = vunpack.c.l.b16 %v1088
        %v1318 = vunpack.c.h.b16 %v1088
        %v1319 = vunpack.c.l.b16 %v1089
        %v1320 = vunpack.c.h.b16 %v1089
        %v1321 = vunpack.c.l.b16 %v1090
        %v1322 = vunpack.c.h.b16 %v1090
        %v1323 = vunpack.c.l.b16 %v1091
        %v1324 = vunpack.c.h.b16 %v1091
        %v1325 = vunpack.c.l.b16 %v1092
        %v1326 = vunpack.c.h.b16 %v1092
        %v1327 = vunpack.c.l.b16 %v1093
        %v1328 = vunpack.c.h.b16 %v1093
        %v1329 = vunpack.c.l.b16 %v1094
        %v1330 = vunpack.c.h.b16 %v1094
        %v1331 = vunpack.c.l.b16 %v1095
        %v1332 = vunpack.c.h.b16 %v1095
        %v1333 = vunpack.c.l.b16 %v1096
        %v1334 = vunpack.c.h.b16 %v1096
        %v1335 = vunpack.c.l.b16 %v1097
        %v1336 = vunpack.c.h.b16 %v1097
        %v1337 = vunpack.c.l.b16 %v1098
        %v1338 = vunpack.c.h.b16 %v1098
        %v1339 = vunpack.c.l.b16 %v1099
        %v1340 = vunpack.c.h.b16 %v1099
        %v1341 = vunpack.c.l.b16 %v1100
        %v1342 = vunpack.c.h.b16 %v1100
        %v1343 = vunpack.c.l.b16 %v1101
        %v1344 = vunpack.c.h.b16 %v1101
        %v1345 = vunpack.c.l.b16 %v1102
        %v1346 = vunpack.c.h.b16 %v1102
        %v1347 = vunpack.c.l.b16 %v1103
        %v1348 = vunpack.c.h.b16 %v1103
        %v1349 = vunpack.c.l.b16 %v1104
        %v1350 = vunpack.c.h.b16 %v1104
        %v1351 = vunpack.c.l.b16 %v1105
        %v1352 = vunpack.c.h.b16 %v1105
        %v1353 = vunpack.c.l.b16 %v1106
        %v1354 = vunpack.c.h.b16 %v1106
        %v1355 = vunpack.c.l.b16 %v1107
        %v1356 = vunpack.c.h.b16 %v1107
        %v1357 = vpack.c.b16 %v1233, %v1229
        %v1358 = vpack.c.b16 %v1234, %v1230
        %v1359 = vpack.c.b16 %v1235, %v1231
        %v1360 = vpack.c.b16 %v1236, %v1232
        %v1361 = vpack.c.b16 %v1241, %v1237
        %v1362 = vpack.c.b16 %v1242, %v1238
        %v1363 = vpack.c.b16 %v1243, %v1239
        %v1364 = vpack.c.b16 %v1244, %v1240
        %v1365 = vpack.c.b16 %v1249, %v1245
        %v1366 = vpack.c.b16 %v1250, %v1246
        %v1367 = vpack.c.b16 %v1251, %v1247
        %v1368 = vpack.c.b16 %v1252, %v1248
        %v1369 = vpack.c.b16 %v1257, %v1253
        %v1370 = vpack.c.b16 %v1258, %v1254
        %v1371 = vpack.c.b16 %v1259, %v1255
        %v1372 = vpack.c.b16 %v1260, %v1256
        %v1373 = vpack.c.b16 %v1265, %v1261
        %v1374 = vpack.c.b16 %v1266, %v1262
        %v1375 = vpack.c.b16 %v1267, %v1263
        %v1376 = vpack.c.b16 %v1268, %v1264
        %v1377 = vpack.c.b16 %v1273, %v1269
        %v1378 = vpack.c.b16 %v1274, %v1270
        %v1379 = vpack.c.b16 %v1275, %v1271
        %v1380 = vpack.c.b16 %v1276, %v1272
        %v1381 = vpack.c.b16 %v1281, %v1277
        %v1382 = vpack.c.b16 %v1282, %v1278
        %v1383 = vpack.c.b16 %v1283, %v1279
        %v1384 = vpack.c.b16 %v1284, %v1280
        %v1385 = vpack.c.b16 %v1289, %v1285
        %v1386 = vpack.c.b16 %v1290, %v1286
        %v1387 = vpack.c.b16 %v1291, %v1287
        %v1388 = vpack.c.b16 %v1292, %v1288
        %v1389 = vpack.c.b16 %v1297, %v1293
        %v1390 = vpack.c.b16 %v1298, %v1294
        %v1391 = vpack.c.b16 %v1299, %v1295
        %v1392 = vpack.c.b16 %v1300, %v1296
        %v1393 = vpack.c.b16 %v1305, %v1301
        %v1394 = vpack.c.b16 %v1306, %v1302
        %v1395 = vpack.c.b16 %v1307, %v1303
        %v1396 = vpack.c.b16 %v1308, %v1304
        %v1397 = vpack.c.b16 %v1313, %v1309
        %v1398 = vpack.c.b16 %v1314, %v1310
        %v1399 = vpack.c.b16 %v1315, %v1311
        %v1400 = vpack.c.b16 %v1316, %v1312
        %v1401 = vpack.c.b16 %v1321, %v1317
        %v1402 = vpack.c.b16 %v1322, %v1318
        %v1403 = vpack.c.b16 %v1323, %v1319
        %v1404 = vpack.c.b16 %v1324, %v1320
        %v1405 = vpack.c.b16 %v1329, %v1325
        %v1406 = vpack.c.b16 %v1330, %v1326
        %v1407 = vpack.c.b16 %v1331, %v1327
        %v1408 = vpack.c.b16 %v1332, %v1328
        %v1409 = vpack.c.b16 %v1337, %v1333
        %v1410 = vpack.c.b16 %v1338, %v1334
        %v1411 = vpack.c.b16 %v1339, %v1335
        %v1412 = vpack.c.b16 %v1340, %v1336
        %v1413 = vpack.c.b16 %v1345, %v1341
        %v1414 = vpack.c.b16 %v1346, %v1342
        %v1415 = vpack.c.b16 %v1347, %v1343
        %v1416 = vpack.c.b16 %v1348, %v1344
        %v1417 = vpack.c.b16 %v1353, %v1349
        %v1418 = vpack.c.b16 %v1354, %v1350
        %v1419 = vpack.c.b16 %v1355, %v1351
        %v1420 = vpack.c.b16 %v1356, %v1352
        %1485 = vmatprep.subr.bf16.mxu0 %v1358
        %1486 = vmatpush1.bf16.msra.mxu0 %v1357
        %1487 = vmatprep.subr.bf16.mxu0 %v1362
        %1488 = vmatpush1.bf16.msra.mxu0 %v1361
        %1489 = vmatprep.subr.bf16.mxu0 %v1366
        %1490 = vmatpush1.bf16.msra.mxu0 %v1365
        %1491 = vmatprep.subr.bf16.mxu0 %v1370
        %1492 = vmatpush1.bf16.msra.mxu0 %v1369
        %1493 = vmatprep.subr.bf16.mxu0 %v1374
        %1494 = vmatpush1.bf16.msra.mxu0 %v1373
        %1495 = vmatprep.subr.bf16.mxu0 %v1378
        %1496 = vmatpush1.bf16.msra.mxu0 %v1377
        %1497 = vmatprep.subr.bf16.mxu0 %v1382
        %1498 = vmatpush1.bf16.msra.mxu0 %v1381
        %1499 = vmatprep.subr.bf16.mxu0 %v1386
        %1500 = vmatpush1.bf16.msra.mxu0 %v1385
        %1501 = vmatprep.subr.bf16.mxu0 %v1390
        %1502 = vmatpush1.bf16.msra.mxu0 %v1389
        %1503 = vmatprep.subr.bf16.mxu0 %v1394
        %1504 = vmatpush1.bf16.msra.mxu0 %v1393
        %1505 = vmatprep.subr.bf16.mxu0 %v1398
        %1506 = vmatpush1.bf16.msra.mxu0 %v1397
        %1507 = vmatprep.subr.bf16.mxu0 %v1402
        %1508 = vmatpush1.bf16.msra.mxu0 %v1401
        %1509 = vmatprep.subr.bf16.mxu0 %v1406
        %1510 = vmatpush1.bf16.msra.mxu0 %v1405
        %1511 = vmatprep.subr.bf16.mxu0 %v1410
        %1512 = vmatpush1.bf16.msra.mxu0 %v1409
        %1513 = vmatprep.subr.bf16.mxu0 %v1414
        %1514 = vmatpush1.bf16.msra.mxu0 %v1413
        %1515 = vmatprep.subr.bf16.mxu0 %v1418
        %1516 = vmatpush1.bf16.msra.mxu0 %v1417
        %1517 = vmatprep.mubr.bf16.mxu0 %v1162
        %1518 = vmatmul.mubr.bf16.gmra.mrb[0].mxu0 %v1161
        %v1519 = vpop.f32.mrb[0].mxu0
        %v1520 = vadd.f32 0.0, %v1519
        %v1521 = vpop.f32.mrb[0].mxu0
        %v1522 = vadd.f32 0.0, %v1521
        %v1523 = vpop.f32.mrb[0].mxu0
        %v1524 = vpop.f32.mrb[0].mxu0
        %1525 = vdwg.mxu0
        %1526 = vmatprep.subr.bf16.mxu0 %v1360
        %1527 = vmatpush1.bf16.msra.mxu0 %v1359
        %1528 = vmatprep.subr.bf16.mxu0 %v1364
        %1529 = vmatpush1.bf16.msra.mxu0 %v1363
        %1530 = vmatprep.subr.bf16.mxu0 %v1368
        %1531 = vmatpush1.bf16.msra.mxu0 %v1367
        %1532 = vmatprep.subr.bf16.mxu0 %v1372
        %1533 = vmatpush1.bf16.msra.mxu0 %v1371
        %1534 = vmatprep.subr.bf16.mxu0 %v1376
        %1535 = vmatpush1.bf16.msra.mxu0 %v1375
        %1536 = vmatprep.subr.bf16.mxu0 %v1380
        %1537 = vmatpush1.bf16.msra.mxu0 %v1379
        %1538 = vmatprep.subr.bf16.mxu0 %v1384
        %1539 = vmatpush1.bf16.msra.mxu0 %v1383
        %1540 = vmatprep.subr.bf16.mxu0 %v1388
        %1541 = vmatpush1.bf16.msra.mxu0 %v1387
        %1542 = vmatprep.subr.bf16.mxu0 %v1392
        %1543 = vmatpush1.bf16.msra.mxu0 %v1391
        %1544 = vmatprep.subr.bf16.mxu0 %v1396
        %1545 = vmatpush1.bf16.msra.mxu0 %v1395
        %1546 = vmatprep.subr.bf16.mxu0 %v1400
        %1547 = vmatpush1.bf16.msra.mxu0 %v1399
        %1548 = vmatprep.subr.bf16.mxu0 %v1404
        %1549 = vmatpush1.bf16.msra.mxu0 %v1403
        %1550 = vmatprep.subr.bf16.mxu0 %v1408
        %1551 = vmatpush1.bf16.msra.mxu0 %v1407
        %1552 = vmatprep.subr.bf16.mxu0 %v1412
        %1553 = vmatpush1.bf16.msra.mxu0 %v1411
        %1554 = vmatprep.subr.bf16.mxu0 %v1416
        %1555 = vmatpush1.bf16.msra.mxu0 %v1415
        %1556 = vmatprep.subr.bf16.mxu0 %v1420
        %1557 = vmatpush1.bf16.msra.mxu0 %v1419
        %1558 = vmatprep.mubr.bf16.mxu0 %v1162
        %1559 = vmatmul.mubr.bf16.gmra.mrb[0].mxu0 %v1161
        %v1560 = vpop.f32.mrb[0].mxu0
        %v1561 = vadd.f32 0.0, %v1560
        %v1562 = vpop.f32.mrb[0].mxu0
        %v1563 = vadd.f32 0.0, %v1562
        %v1564 = vpop.f32.mrb[0].mxu0
        %v1565 = vpop.f32.mrb[0].mxu0
        %1566 = vdwg.mxu0
        %v1567 = vpack.c.bf16 %v898, %v894
        %v1568 = vpack.c.bf16 %v900, %v896
        %v1569 = vpack.c.bf16 %v908, %v904
        %v1570 = vpack.c.bf16 %v910, %v906
        %v1571 = vpack.c.bf16 %v918, %v914
        %v1572 = vpack.c.bf16 %v920, %v916
        %v1573 = vpack.c.bf16 %v928, %v924
        %v1574 = vpack.c.bf16 %v930, %v926
        %v1575 = vld [vmem:[#allocation2] sm:$0xff]
        %v1576 = vld [vmem:[#allocation2 + $0x8] sm:$0xff]
        %v1577 = vld [vmem:[#allocation2 + $0x10] sm:$0xff]
        %v1578 = vld [vmem:[#allocation2 + $0x18] sm:$0xff]
        %v1579 = vld [vmem:[#allocation2 + $0x20] sm:$0xff]
        %v1580 = vld [vmem:[#allocation2 + $0x28] sm:$0xff]
        %v1581 = vld [vmem:[#allocation2 + $0x30] sm:$0xff]
        %v1582 = vld [vmem:[#allocation2 + $0x38] sm:$0xff]
        %v1583 = vld [vmem:[#allocation2 + $0x40] sm:$0xff]
        %v1584 = vld [vmem:[#allocation2 + $0x48] sm:$0xff]
        %v1585 = vld [vmem:[#allocation2 + $0x50] sm:$0xff]
        %v1586 = vld [vmem:[#allocation2 + $0x58] sm:$0xff]
        %v1587 = vld [vmem:[#allocation2 + $0x60] sm:$0xff]
        %v1588 = vld [vmem:[#allocation2 + $0x68] sm:$0xff]
        %v1589 = vld [vmem:[#allocation2 + $0x70] sm:$0xff]
        %v1590 = vld [vmem:[#allocation2 + $0x78] sm:$0xff]
        %v1591 = vld [vmem:[#allocation2 + $0x80] sm:$0xff]
        %v1592 = vld [vmem:[#allocation2 + $0x88] sm:$0xff]
        %v1593 = vld [vmem:[#allocation2 + $0x90] sm:$0xff]
        %v1594 = vld [vmem:[#allocation2 + $0x98] sm:$0xff]
        %v1595 = vld [vmem:[#allocation2 + $0xa0] sm:$0xff]
        %v1596 = vld [vmem:[#allocation2 + $0xa8] sm:$0xff]
        %v1597 = vld [vmem:[#allocation2 + $0xb0] sm:$0xff]
        %v1598 = vld [vmem:[#allocation2 + $0xb8] sm:$0xff]
        %v1599 = vld [vmem:[#allocation2 + $0xc0] sm:$0xff]
        %v1600 = vld [vmem:[#allocation2 + $0xc8] sm:$0xff]
        %v1601 = vld [vmem:[#allocation2 + $0xd0] sm:$0xff]
        %v1602 = vld [vmem:[#allocation2 + $0xd8] sm:$0xff]
        %v1603 = vld [vmem:[#allocation2 + $0xe0] sm:$0xff]
        %v1604 = vld [vmem:[#allocation2 + $0xe8] sm:$0xff]
        %v1605 = vld [vmem:[#allocation2 + $0xf0] sm:$0xff]
        %v1606 = vld [vmem:[#allocation2 + $0xf8] sm:$0xff]
        %v1607 = vld [vmem:[#allocation2 + $0x100] sm:$0xff]
        %v1608 = vld [vmem:[#allocation2 + $0x108] sm:$0xff]
        %v1609 = vld [vmem:[#allocation2 + $0x110] sm:$0xff]
        %v1610 = vld [vmem:[#allocation2 + $0x118] sm:$0xff]
        %v1611 = vld [vmem:[#allocation2 + $0x120] sm:$0xff]
        %v1612 = vld [vmem:[#allocation2 + $0x128] sm:$0xff]
        %v1613 = vld [vmem:[#allocation2 + $0x130] sm:$0xff]
        %v1614 = vld [vmem:[#allocation2 + $0x138] sm:$0xff]
        %v1615 = vld [vmem:[#allocation2 + $0x140] sm:$0xff]
        %v1616 = vld [vmem:[#allocation2 + $0x148] sm:$0xff]
        %v1617 = vld [vmem:[#allocation2 + $0x150] sm:$0xff]
        %v1618 = vld [vmem:[#allocation2 + $0x158] sm:$0xff]
        %v1619 = vld [vmem:[#allocation2 + $0x160] sm:$0xff]
        %v1620 = vld [vmem:[#allocation2 + $0x168] sm:$0xff]
        %v1621 = vld [vmem:[#allocation2 + $0x170] sm:$0xff]
        %v1622 = vld [vmem:[#allocation2 + $0x178] sm:$0xff]
        %v1623 = vld [vmem:[#allocation2 + $0x180] sm:$0xff]
        %v1624 = vld [vmem:[#allocation2 + $0x188] sm:$0xff]
        %v1625 = vld [vmem:[#allocation2 + $0x190] sm:$0xff]
        %v1626 = vld [vmem:[#allocation2 + $0x198] sm:$0xff]
        %v1627 = vld [vmem:[#allocation2 + $0x1a0] sm:$0xff]
        %v1628 = vld [vmem:[#allocation2 + $0x1a8] sm:$0xff]
        %v1629 = vld [vmem:[#allocation2 + $0x1b0] sm:$0xff]
        %v1630 = vld [vmem:[#allocation2 + $0x1b8] sm:$0xff]
        %v1631 = vld [vmem:[#allocation2 + $0x1c0] sm:$0xff]
        %v1632 = vld [vmem:[#allocation2 + $0x1c8] sm:$0xff]
        %v1633 = vld [vmem:[#allocation2 + $0x1d0] sm:$0xff]
        %v1634 = vld [vmem:[#allocation2 + $0x1d8] sm:$0xff]
        %v1635 = vld [vmem:[#allocation2 + $0x1e0] sm:$0xff]
        %v1636 = vld [vmem:[#allocation2 + $0x1e8] sm:$0xff]
        %v1637 = vld [vmem:[#allocation2 + $0x1f0] sm:$0xff]
        %v1638 = vld [vmem:[#allocation2 + $0x1f8] sm:$0xff]
        %v1639 = vld [vmem:[%s8] sm:$0xf]
        %v1641 = vlaneseq
        %v1642 = vshrl.u32 %v1641, 7
        %v1643 = vsub.s32 0, %v1642
        %v1644 = vrot.slane %v1639, %v1643
        %v1645 = vlaneseq
        %v1646 = vshrl.u32 %v1645, 7
        %v1647 = vsub.s32 1, %v1646
        %v1648 = vrot.slane %v1639, %v1647
        %v1649 = vlaneseq
        %v1650 = vshrl.u32 %v1649, 7
        %v1651 = vsub.s32 2, %v1650
        %v1652 = vrot.slane %v1639, %v1651
        %v1653 = vlaneseq
        %v1654 = vshrl.u32 %v1653, 7
        %v1655 = vsub.s32 3, %v1654
        %v1656 = vrot.slane %v1639, %v1655
        %v1725 = vunpack.c.l.b16 %v1575
        %v1726 = vunpack.c.h.b16 %v1575
        %v1727 = vunpack.c.l.b16 %v1576
        %v1728 = vunpack.c.h.b16 %v1576
        %v1729 = vunpack.c.l.b16 %v1577
        %v1730 = vunpack.c.h.b16 %v1577
        %v1731 = vunpack.c.l.b16 %v1578
        %v1732 = vunpack.c.h.b16 %v1578
        %v1733 = vunpack.c.l.b16 %v1579
        %v1734 = vunpack.c.h.b16 %v1579
        %v1735 = vunpack.c.l.b16 %v1580
        %v1736 = vunpack.c.h.b16 %v1580
        %v1737 = vunpack.c.l.b16 %v1581
        %v1738 = vunpack.c.h.b16 %v1581
        %v1739 = vunpack.c.l.b16 %v1582
        %v1740 = vunpack.c.h.b16 %v1582
        %v1741 = vunpack.c.l.b16 %v1583
        %v1742 = vunpack.c.h.b16 %v1583
        %v1743 = vunpack.c.l.b16 %v1584
        %v1744 = vunpack.c.h.b16 %v1584
        %v1745 = vunpack.c.l.b16 %v1585
        %v1746 = vunpack.c.h.b16 %v1585
        %v1747 = vunpack.c.l.b16 %v1586
        %v1748 = vunpack.c.h.b16 %v1586
        %v1749 = vunpack.c.l.b16 %v1587
        %v1750 = vunpack.c.h.b16 %v1587
        %v1751 = vunpack.c.l.b16 %v1588
        %v1752 = vunpack.c.h.b16 %v1588
        %v1753 = vunpack.c.l.b16 %v1589
        %v1754 = vunpack.c.h.b16 %v1589
        %v1755 = vunpack.c.l.b16 %v1590
        %v1756 = vunpack.c.h.b16 %v1590
        %v1757 = vunpack.c.l.b16 %v1591
        %v1758 = vunpack.c.h.b16 %v1591
        %v1759 = vunpack.c.l.b16 %v1592
        %v1760 = vunpack.c.h.b16 %v1592
        %v1761 = vunpack.c.l.b16 %v1593
        %v1762 = vunpack.c.h.b16 %v1593
        %v1763 = vunpack.c.l.b16 %v1594
        %v1764 = vunpack.c.h.b16 %v1594
        %v1765 = vunpack.c.l.b16 %v1595
        %v1766 = vunpack.c.h.b16 %v1595
        %v1767 = vunpack.c.l.b16 %v1596
        %v1768 = vunpack.c.h.b16 %v1596
        %v1769 = vunpack.c.l.b16 %v1597
        %v1770 = vunpack.c.h.b16 %v1597
        %v1771 = vunpack.c.l.b16 %v1598
        %v1772 = vunpack.c.h.b16 %v1598
        %v1773 = vunpack.c.l.b16 %v1599
        %v1774 = vunpack.c.h.b16 %v1599
        %v1775 = vunpack.c.l.b16 %v1600
        %v1776 = vunpack.c.h.b16 %v1600
        %v1777 = vunpack.c.l.b16 %v1601
        %v1778 = vunpack.c.h.b16 %v1601
        %v1779 = vunpack.c.l.b16 %v1602
        %v1780 = vunpack.c.h.b16 %v1602
        %v1781 = vunpack.c.l.b16 %v1603
        %v1782 = vunpack.c.h.b16 %v1603
        %v1783 = vunpack.c.l.b16 %v1604
        %v1784 = vunpack.c.h.b16 %v1604
        %v1785 = vunpack.c.l.b16 %v1605
        %v1786 = vunpack.c.h.b16 %v1605
        %v1787 = vunpack.c.l.b16 %v1606
        %v1788 = vunpack.c.h.b16 %v1606
        %v1789 = vunpack.c.l.b16 %v1607
        %v1790 = vunpack.c.h.b16 %v1607
        %v1791 = vunpack.c.l.b16 %v1608
        %v1792 = vunpack.c.h.b16 %v1608
        %v1793 = vunpack.c.l.b16 %v1609
        %v1794 = vunpack.c.h.b16 %v1609
        %v1795 = vunpack.c.l.b16 %v1610
        %v1796 = vunpack.c.h.b16 %v1610
        %v1797 = vunpack.c.l.b16 %v1611
        %v1798 = vunpack.c.h.b16 %v1611
        %v1799 = vunpack.c.l.b16 %v1612
        %v1800 = vunpack.c.h.b16 %v1612
        %v1801 = vunpack.c.l.b16 %v1613
        %v1802 = vunpack.c.h.b16 %v1613
        %v1803 = vunpack.c.l.b16 %v1614
        %v1804 = vunpack.c.h.b16 %v1614
        %v1805 = vunpack.c.l.b16 %v1615
        %v1806 = vunpack.c.h.b16 %v1615
        %v1807 = vunpack.c.l.b16 %v1616
        %v1808 = vunpack.c.h.b16 %v1616
        %v1809 = vunpack.c.l.b16 %v1617
        %v1810 = vunpack.c.h.b16 %v1617
        %v1811 = vunpack.c.l.b16 %v1618
        %v1812 = vunpack.c.h.b16 %v1618
        %v1813 = vunpack.c.l.b16 %v1619
        %v1814 = vunpack.c.h.b16 %v1619
        %v1815 = vunpack.c.l.b16 %v1620
        %v1816 = vunpack.c.h.b16 %v1620
        %v1817 = vunpack.c.l.b16 %v1621
        %v1818 = vunpack.c.h.b16 %v1621
        %v1819 = vunpack.c.l.b16 %v1622
        %v1820 = vunpack.c.h.b16 %v1622
        %v1821 = vunpack.c.l.b16 %v1623
        %v1822 = vunpack.c.h.b16 %v1623
        %v1823 = vunpack.c.l.b16 %v1624
        %v1824 = vunpack.c.h.b16 %v1624
        %v1825 = vunpack.c.l.b16 %v1625
        %v1826 = vunpack.c.h.b16 %v1625
        %v1827 = vunpack.c.l.b16 %v1626
        %v1828 = vunpack.c.h.b16 %v1626
        %v1829 = vunpack.c.l.b16 %v1627
        %v1830 = vunpack.c.h.b16 %v1627
        %v1831 = vunpack.c.l.b16 %v1628
        %v1832 = vunpack.c.h.b16 %v1628
        %v1833 = vunpack.c.l.b16 %v1629
        %v1834 = vunpack.c.h.b16 %v1629
        %v1835 = vunpack.c.l.b16 %v1630
        %v1836 = vunpack.c.h.b16 %v1630
        %v1837 = vunpack.c.l.b16 %v1631
        %v1838 = vunpack.c.h.b16 %v1631
        %v1839 = vunpack.c.l.b16 %v1632
        %v1840 = vunpack.c.h.b16 %v1632
        %v1841 = vunpack.c.l.b16 %v1633
        %v1842 = vunpack.c.h.b16 %v1633
        %v1843 = vunpack.c.l.b16 %v1634
        %v1844 = vunpack.c.h.b16 %v1634
        %v1845 = vunpack.c.l.b16 %v1635
        %v1846 = vunpack.c.h.b16 %v1635
        %v1847 = vunpack.c.l.b16 %v1636
        %v1848 = vunpack.c.h.b16 %v1636
        %v1849 = vunpack.c.l.b16 %v1637
        %v1850 = vunpack.c.h.b16 %v1637
        %v1851 = vunpack.c.l.b16 %v1638
        %v1852 = vunpack.c.h.b16 %v1638
        %v1853 = vpack.c.b16 %v1729, %v1725
        %v1854 = vpack.c.b16 %v1730, %v1726
        %v1855 = vpack.c.b16 %v1731, %v1727
        %v1856 = vpack.c.b16 %v1732, %v1728
        %v1857 = vpack.c.b16 %v1737, %v1733
        %v1858 = vpack.c.b16 %v1738, %v1734
        %v1859 = vpack.c.b16 %v1739, %v1735
        %v1860 = vpack.c.b16 %v1740, %v1736
        %v1861 = vpack.c.b16 %v1745, %v1741
        %v1862 = vpack.c.b16 %v1746, %v1742
        %v1863 = vpack.c.b16 %v1747, %v1743
        %v1864 = vpack.c.b16 %v1748, %v1744
        %v1865 = vpack.c.b16 %v1753, %v1749
        %v1866 = vpack.c.b16 %v1754, %v1750
        %v1867 = vpack.c.b16 %v1755, %v1751
        %v1868 = vpack.c.b16 %v1756, %v1752
        %v1869 = vpack.c.b16 %v1761, %v1757
        %v1870 = vpack.c.b16 %v1762, %v1758
        %v1871 = vpack.c.b16 %v1763, %v1759
        %v1872 = vpack.c.b16 %v1764, %v1760
        %v1873 = vpack.c.b16 %v1769, %v1765
        %v1874 = vpack.c.b16 %v1770, %v1766
        %v1875 = vpack.c.b16 %v1771, %v1767
        %v1876 = vpack.c.b16 %v1772, %v1768
        %v1877 = vpack.c.b16 %v1777, %v1773
        %v1878 = vpack.c.b16 %v1778, %v1774
        %v1879 = vpack.c.b16 %v1779, %v1775
        %v1880 = vpack.c.b16 %v1780, %v1776
        %v1881 = vpack.c.b16 %v1785, %v1781
        %v1882 = vpack.c.b16 %v1786, %v1782
        %v1883 = vpack.c.b16 %v1787, %v1783
        %v1884 = vpack.c.b16 %v1788, %v1784
        %v1885 = vpack.c.b16 %v1793, %v1789
        %v1886 = vpack.c.b16 %v1794, %v1790
        %v1887 = vpack.c.b16 %v1795, %v1791
        %v1888 = vpack.c.b16 %v1796, %v1792
        %v1889 = vpack.c.b16 %v1801, %v1797
        %v1890 = vpack.c.b16 %v1802, %v1798
        %v1891 = vpack.c.b16 %v1803, %v1799
        %v1892 = vpack.c.b16 %v1804, %v1800
        %v1893 = vpack.c.b16 %v1809, %v1805
        %v1894 = vpack.c.b16 %v1810, %v1806
        %v1895 = vpack.c.b16 %v1811, %v1807
        %v1896 = vpack.c.b16 %v1812, %v1808
        %v1897 = vpack.c.b16 %v1817, %v1813
        %v1898 = vpack.c.b16 %v1818, %v1814
        %v1899 = vpack.c.b16 %v1819, %v1815
        %v1900 = vpack.c.b16 %v1820, %v1816
        %v1901 = vpack.c.b16 %v1825, %v1821
        %v1902 = vpack.c.b16 %v1826, %v1822
        %v1903 = vpack.c.b16 %v1827, %v1823
        %v1904 = vpack.c.b16 %v1828, %v1824
        %v1905 = vpack.c.b16 %v1833, %v1829
        %v1906 = vpack.c.b16 %v1834, %v1830
        %v1907 = vpack.c.b16 %v1835, %v1831
        %v1908 = vpack.c.b16 %v1836, %v1832
        %v1909 = vpack.c.b16 %v1841, %v1837
        %v1910 = vpack.c.b16 %v1842, %v1838
        %v1911 = vpack.c.b16 %v1843, %v1839
        %v1912 = vpack.c.b16 %v1844, %v1840
        %v1913 = vpack.c.b16 %v1849, %v1845
        %v1914 = vpack.c.b16 %v1850, %v1846
        %v1915 = vpack.c.b16 %v1851, %v1847
        %v1916 = vpack.c.b16 %v1852, %v1848
        %1981 = vmatprep.subr.bf16.mxu0 %v1854
        %1982 = vmatpush1.bf16.msra.mxu0 %v1853
        %1983 = vmatprep.subr.bf16.mxu0 %v1858
        %1984 = vmatpush1.bf16.msra.mxu0 %v1857
        %1985 = vmatprep.subr.bf16.mxu0 %v1862
        %1986 = vmatpush1.bf16.msra.mxu0 %v1861
        %1987 = vmatprep.subr.bf16.mxu0 %v1866
        %1988 = vmatpush1.bf16.msra.mxu0 %v1865
        %1989 = vmatprep.subr.bf16.mxu0 %v1870
        %1990 = vmatpush1.bf16.msra.mxu0 %v1869
        %1991 = vmatprep.subr.bf16.mxu0 %v1874
        %1992 = vmatpush1.bf16.msra.mxu0 %v1873
        %1993 = vmatprep.subr.bf16.mxu0 %v1878
        %1994 = vmatpush1.bf16.msra.mxu0 %v1877
        %1995 = vmatprep.subr.bf16.mxu0 %v1882
        %1996 = vmatpush1.bf16.msra.mxu0 %v1881
        %1997 = vmatprep.subr.bf16.mxu0 %v1886
        %1998 = vmatpush1.bf16.msra.mxu0 %v1885
        %1999 = vmatprep.subr.bf16.mxu0 %v1890
        %2000 = vmatpush1.bf16.msra.mxu0 %v1889
        %2001 = vmatprep.subr.bf16.mxu0 %v1894
        %2002 = vmatpush1.bf16.msra.mxu0 %v1893
        %2003 = vmatprep.subr.bf16.mxu0 %v1898
        %2004 = vmatpush1.bf16.msra.mxu0 %v1897
        %2005 = vmatprep.subr.bf16.mxu0 %v1902
        %2006 = vmatpush1.bf16.msra.mxu0 %v1901
        %2007 = vmatprep.subr.bf16.mxu0 %v1906
        %2008 = vmatpush1.bf16.msra.mxu0 %v1905
        %2009 = vmatprep.subr.bf16.mxu0 %v1910
        %2010 = vmatpush1.bf16.msra.mxu0 %v1909
        %2011 = vmatprep.subr.bf16.mxu0 %v1914
        %2012 = vmatpush1.bf16.msra.mxu0 %v1913
        %2013 = vmatprep.mubr.bf16.mxu0 %v1568
        %2014 = vmatmul.mubr.bf16.gmra.mrb[0].mxu0 %v1567
        %v2015 = vpop.f32.mrb[0].mxu0
        %v2016 = vadd.f32 %v1644, %v2015
        %v2017 = vpop.f32.mrb[0].mxu0
        %v2018 = vadd.f32 %v1648, %v2017
        %v2019 = vpop.f32.mrb[0].mxu0
        %v2020 = vadd.f32 %v1644, %v2019
        %v2021 = vpop.f32.mrb[0].mxu0
        %v2022 = vadd.f32 %v1648, %v2021
        %2023 = vmatprep.mubr.bf16.mxu0 %v1570
        %2024 = vmatmul.mubr.bf16.gmra.mrb[0].mxu0 %v1569
        %v2025 = vpop.f32.mrb[0].mxu0
        %v2026 = vadd.f32 %v1644, %v2025
        %v2027 = vpop.f32.mrb[0].mxu0
        %v2028 = vadd.f32 %v1648, %v2027
        %v2029 = vpop.f32.mrb[0].mxu0
        %v2030 = vadd.f32 %v1644, %v2029
        %v2031 = vpop.f32.mrb[0].mxu0
        %v2032 = vadd.f32 %v1648, %v2031
        %2033 = vmatprep.mubr.bf16.mxu0 %v1572
        %2034 = vmatmul.mubr.bf16.gmra.mrb[0].mxu0 %v1571
        %v2035 = vpop.f32.mrb[0].mxu0
        %v2036 = vadd.f32 %v1644, %v2035
        %v2037 = vpop.f32.mrb[0].mxu0
        %v2038 = vadd.f32 %v1648, %v2037
        %v2039 = vpop.f32.mrb[0].mxu0
        %v2040 = vadd.f32 %v1644, %v2039
        %v2041 = vpop.f32.mrb[0].mxu0
        %v2042 = vadd.f32 %v1648, %v2041
        %2043 = vmatprep.mubr.bf16.mxu0 %v1574
        %2044 = vmatmul.mubr.bf16.gmra.mrb[0].mxu0 %v1573
        %v2045 = vpop.f32.mrb[0].mxu0
        %v2046 = vadd.f32 %v1644, %v2045
        %v2047 = vpop.f32.mrb[0].mxu0
        %v2048 = vadd.f32 %v1648, %v2047
        %v2049 = vpop.f32.mrb[0].mxu0
        %v2050 = vadd.f32 %v1644, %v2049
        %v2051 = vpop.f32.mrb[0].mxu0
        %v2052 = vadd.f32 %v1648, %v2051
        %2053 = vdwg.mxu0
        %2054 = vmatprep.subr.bf16.mxu0 %v1856
        %2055 = vmatpush1.bf16.msra.mxu0 %v1855
        %2056 = vmatprep.subr.bf16.mxu0 %v1860
        %2057 = vmatpush1.bf16.msra.mxu0 %v1859
        %2058 = vmatprep.subr.bf16.mxu0 %v1864
        %2059 = vmatpush1.bf16.msra.mxu0 %v1863
        %2060 = vmatprep.subr.bf16.mxu0 %v1868
        %2061 = vmatpush1.bf16.msra.mxu0 %v1867
        %2062 = vmatprep.subr.bf16.mxu0 %v1872
        %2063 = vmatpush1.bf16.msra.mxu0 %v1871
        %2064 = vmatprep.subr.bf16.mxu0 %v1876
        %2065 = vmatpush1.bf16.msra.mxu0 %v1875
        %2066 = vmatprep.subr.bf16.mxu0 %v1880
        %2067 = vmatpush1.bf16.msra.mxu0 %v1879
        %2068 = vmatprep.subr.bf16.mxu0 %v1884
        %2069 = vmatpush1.bf16.msra.mxu0 %v1883
        %2070 = vmatprep.subr.bf16.mxu0 %v1888
        %2071 = vmatpush1.bf16.msra.mxu0 %v1887
        %2072 = vmatprep.subr.bf16.mxu0 %v1892
        %2073 = vmatpush1.bf16.msra.mxu0 %v1891
        %2074 = vmatprep.subr.bf16.mxu0 %v1896
        %2075 = vmatpush1.bf16.msra.mxu0 %v1895
        %2076 = vmatprep.subr.bf16.mxu0 %v1900
        %2077 = vmatpush1.bf16.msra.mxu0 %v1899
        %2078 = vmatprep.subr.bf16.mxu0 %v1904
        %2079 = vmatpush1.bf16.msra.mxu0 %v1903
        %2080 = vmatprep.subr.bf16.mxu0 %v1908
        %2081 = vmatpush1.bf16.msra.mxu0 %v1907
        %2082 = vmatprep.subr.bf16.mxu0 %v1912
        %2083 = vmatpush1.bf16.msra.mxu0 %v1911
        %2084 = vmatprep.subr.bf16.mxu0 %v1916
        %2085 = vmatpush1.bf16.msra.mxu0 %v1915
        %2086 = vmatprep.mubr.bf16.mxu0 %v1568
        %2087 = vmatmul.mubr.bf16.gmra.mrb[0].mxu0 %v1567
        %v2088 = vpop.f32.mrb[0].mxu0
        %v2089 = vadd.f32 %v1652, %v2088
        %v2090 = vpop.f32.mrb[0].mxu0
        %v2091 = vadd.f32 %v1656, %v2090
        %v2092 = vpop.f32.mrb[0].mxu0
        %v2093 = vadd.f32 %v1652, %v2092
        %v2094 = vpop.f32.mrb[0].mxu0
        %v2095 = vadd.f32 %v1656, %v2094
        %2096 = vmatprep.mubr.bf16.mxu0 %v1570
        %2097 = vmatmul.mubr.bf16.gmra.mrb[0].mxu0 %v1569
        %v2098 = vpop.f32.mrb[0].mxu0
        %v2099 = vadd.f32 %v1652, %v2098
        %v2100 = vpop.f32.mrb[0].mxu0
        %v2101 = vadd.f32 %v1656, %v2100
        %v2102 = vpop.f32.mrb[0].mxu0
        %v2103 = vadd.f32 %v1652, %v2102
        %v2104 = vpop.f32.mrb[0].mxu0
        %v2105 = vadd.f32 %v1656, %v2104
        %2106 = vmatprep.mubr.bf16.mxu0 %v1572
        %2107 = vmatmul.mubr.bf16.gmra.mrb[0].mxu0 %v1571
        %v2108 = vpop.f32.mrb[0].mxu0
        %v2109 = vadd.f32 %v1652, %v2108
        %v2110 = vpop.f32.mrb[0].mxu0
        %v2111 = vadd.f32 %v1656, %v2110
        %v2112 = vpop.f32.mrb[0].mxu0
        %v2113 = vadd.f32 %v1652, %v2112
        %v2114 = vpop.f32.mrb[0].mxu0
        %v2115 = vadd.f32 %v1656, %v2114
        %2116 = vmatprep.mubr.bf16.mxu0 %v1574
        %2117 = vmatmul.mubr.bf16.gmra.mrb[0].mxu0 %v1573
        %v2118 = vpop.f32.mrb[0].mxu0
        %v2119 = vadd.f32 %v1652, %v2118
        %v2120 = vpop.f32.mrb[0].mxu0
        %v2121 = vadd.f32 %v1656, %v2120
        %v2122 = vpop.f32.mrb[0].mxu0
        %v2123 = vadd.f32 %v1652, %v2122
        %v2124 = vpop.f32.mrb[0].mxu0
        %v2125 = vadd.f32 %v1656, %v2124
        %2126 = vdwg.mxu0
        %v2131 = vcombine.low %v1520, %v1522
        %v2132 = vcombine.high %v1520, %v1522
        %v2133 = vcombine.low %v1561, %v1563
        %v2134 = vcombine.high %v1561, %v1563
        %v2136 = vunpack.c.l.s4 1966171168
        %v2137 = vunpack.c.0.s8 %v2136
        %v2138 = vlaneseq
        %v2139 = vshrl.u32 %v2138, 7
        %v2140 = vsub.s32 %v2137, %v2139
        %v2141 = vrot.slane %v2131, %v2140
        %v2143 = vunpack.c.l.s4 1966171168
        %v2144 = vunpack.c.0.s8 %v2143
        %v2145 = vlaneseq
        %v2146 = vshrl.u32 %v2145, 7
        %v2147 = vsub.s32 %v2144, %v2146
        %v2148 = vrot.slane %v2132, %v2147
        %v2150 = vunpack.c.l.s4 1966171168
        %v2151 = vunpack.c.0.s8 %v2150
        %v2152 = vlaneseq
        %v2153 = vshrl.u32 %v2152, 7
        %v2154 = vsub.s32 %v2151, %v2153
        %v2155 = vrot.slane %v2133, %v2154
        %v2157 = vunpack.c.l.s4 1966171168
        %v2158 = vunpack.c.0.s8 %v2157
        %v2159 = vlaneseq
        %v2160 = vshrl.u32 %v2159, 7
        %v2161 = vsub.s32 %v2158, %v2160
        %v2162 = vrot.slane %v2134, %v2161
        %v2163 = vcombine.low %v2141, %v2155
        %v2164 = vcombine.high %v2141, %v2155
        %v2165 = vcombine.low %v2148, %v2162
        %v2166 = vcombine.high %v2148, %v2162
        %v2168 = vunpack.c.l.s4 1966171168
        %v2169 = vunpack.c.0.s8 %v2168
        %v2170 = vlaneseq
        %v2171 = vshrl.u32 %v2170, 7
        %v2172 = vsub.s32 %v2169, %v2171
        %v2173 = vrot.slane %v2163, %v2172
        %v2175 = vunpack.c.l.s4 1966171168
        %v2176 = vunpack.c.0.s8 %v2175
        %v2177 = vlaneseq
        %v2178 = vshrl.u32 %v2177, 7
        %v2179 = vsub.s32 %v2176, %v2178
        %v2180 = vrot.slane %v2165, %v2179
        %v2182 = vunpack.c.l.s4 1966171168
        %v2183 = vunpack.c.0.s8 %v2182
        %v2184 = vlaneseq
        %v2185 = vshrl.u32 %v2184, 7
        %v2186 = vsub.s32 %v2183, %v2185
        %v2187 = vrot.slane %v2164, %v2186
        %v2189 = vunpack.c.l.s4 1966171168
        %v2190 = vunpack.c.0.s8 %v2189
        %v2191 = vlaneseq
        %v2192 = vshrl.u32 %v2191, 7
        %v2193 = vsub.s32 %v2190, %v2192
        %v2194 = vrot.slane %v2166, %v2193
        %v2195 = vcombine.high %v2173, %v2173
        %v2196 = vcombine.high %v2180, %v2180
        %v2197 = vcombine.high %v2187, %v2187
        %v2198 = vcombine.high %v2194, %v2194
        %v2199 = vlaneseq
        %v2200 = vshrl.u32 %v2199, 7
        %v2201 = vsub.s32 0, %v2200
        %v2202 = vrot.slane %v2173, %v2201
        %v2203 = vlaneseq
        %v2204 = vshrl.u32 %v2203, 7
        %v2205 = vsub.s32 1, %v2204
        %v2206 = vrot.slane %v2173, %v2205
        %v2207 = vlaneseq
        %v2208 = vshrl.u32 %v2207, 7
        %v2209 = vsub.s32 2, %v2208
        %v2210 = vrot.slane %v2173, %v2209
        %v2211 = vlaneseq
        %v2212 = vshrl.u32 %v2211, 7
        %v2213 = vsub.s32 3, %v2212
        %v2214 = vrot.slane %v2173, %v2213
        %v2215 = vlaneseq
        %v2216 = vshrl.u32 %v2215, 7
        %v2217 = vsub.s32 0, %v2216
        %v2218 = vrot.slane %v2187, %v2217
        %v2219 = vlaneseq
        %v2220 = vshrl.u32 %v2219, 7
        %v2221 = vsub.s32 1, %v2220
        %v2222 = vrot.slane %v2187, %v2221
        %v2223 = vlaneseq
        %v2224 = vshrl.u32 %v2223, 7
        %v2225 = vsub.s32 2, %v2224
        %v2226 = vrot.slane %v2187, %v2225
        %v2227 = vlaneseq
        %v2228 = vshrl.u32 %v2227, 7
        %v2229 = vsub.s32 3, %v2228
        %v2230 = vrot.slane %v2187, %v2229
        %v2231 = vlaneseq
        %v2232 = vshrl.u32 %v2231, 7
        %v2233 = vsub.s32 0, %v2232
        %v2234 = vrot.slane %v2195, %v2233
        %v2235 = vlaneseq
        %v2236 = vshrl.u32 %v2235, 7
        %v2237 = vsub.s32 1, %v2236
        %v2238 = vrot.slane %v2195, %v2237
        %v2239 = vlaneseq
        %v2240 = vshrl.u32 %v2239, 7
        %v2241 = vsub.s32 2, %v2240
        %v2242 = vrot.slane %v2195, %v2241
        %v2243 = vlaneseq
        %v2244 = vshrl.u32 %v2243, 7
        %v2245 = vsub.s32 3, %v2244
        %v2246 = vrot.slane %v2195, %v2245
        %v2247 = vlaneseq
        %v2248 = vshrl.u32 %v2247, 7
        %v2249 = vsub.s32 0, %v2248
        %v2250 = vrot.slane %v2197, %v2249
        %v2251 = vlaneseq
        %v2252 = vshrl.u32 %v2251, 7
        %v2253 = vsub.s32 1, %v2252
        %v2254 = vrot.slane %v2197, %v2253
        %v2255 = vlaneseq
        %v2256 = vshrl.u32 %v2255, 7
        %v2257 = vsub.s32 2, %v2256
        %v2258 = vrot.slane %v2197, %v2257
        %v2259 = vlaneseq
        %v2260 = vshrl.u32 %v2259, 7
        %v2261 = vsub.s32 3, %v2260
        %v2262 = vrot.slane %v2197, %v2261
        %v2263 = vlaneseq
        %v2264 = vshrl.u32 %v2263, 7
        %v2265 = vsub.s32 0, %v2264
        %v2266 = vrot.slane %v2180, %v2265
        %v2267 = vlaneseq
        %v2268 = vshrl.u32 %v2267, 7
        %v2269 = vsub.s32 1, %v2268
        %v2270 = vrot.slane %v2180, %v2269
        %v2271 = vlaneseq
        %v2272 = vshrl.u32 %v2271, 7
        %v2273 = vsub.s32 2, %v2272
        %v2274 = vrot.slane %v2180, %v2273
        %v2275 = vlaneseq
        %v2276 = vshrl.u32 %v2275, 7
        %v2277 = vsub.s32 3, %v2276
        %v2278 = vrot.slane %v2180, %v2277
        %v2279 = vlaneseq
        %v2280 = vshrl.u32 %v2279, 7
        %v2281 = vsub.s32 0, %v2280
        %v2282 = vrot.slane %v2194, %v2281
        %v2283 = vlaneseq
        %v2284 = vshrl.u32 %v2283, 7
        %v2285 = vsub.s32 1, %v2284
        %v2286 = vrot.slane %v2194, %v2285
        %v2287 = vlaneseq
        %v2288 = vshrl.u32 %v2287, 7
        %v2289 = vsub.s32 2, %v2288
        %v2290 = vrot.slane %v2194, %v2289
        %v2291 = vlaneseq
        %v2292 = vshrl.u32 %v2291, 7
        %v2293 = vsub.s32 3, %v2292
        %v2294 = vrot.slane %v2194, %v2293
        %v2295 = vlaneseq
        %v2296 = vshrl.u32 %v2295, 7
        %v2297 = vsub.s32 0, %v2296
        %v2298 = vrot.slane %v2196, %v2297
        %v2299 = vlaneseq
        %v2300 = vshrl.u32 %v2299, 7
        %v2301 = vsub.s32 1, %v2300
        %v2302 = vrot.slane %v2196, %v2301
        %v2303 = vlaneseq
        %v2304 = vshrl.u32 %v2303, 7
        %v2305 = vsub.s32 2, %v2304
        %v2306 = vrot.slane %v2196, %v2305
        %v2307 = vlaneseq
        %v2308 = vshrl.u32 %v2307, 7
        %v2309 = vsub.s32 3, %v2308
        %v2310 = vrot.slane %v2196, %v2309
        %v2311 = vlaneseq
        %v2312 = vshrl.u32 %v2311, 7
        %v2313 = vsub.s32 0, %v2312
        %v2314 = vrot.slane %v2198, %v2313
        %v2315 = vlaneseq
        %v2316 = vshrl.u32 %v2315, 7
        %v2317 = vsub.s32 1, %v2316
        %v2318 = vrot.slane %v2198, %v2317
        %v2319 = vlaneseq
        %v2320 = vshrl.u32 %v2319, 7
        %v2321 = vsub.s32 2, %v2320
        %v2322 = vrot.slane %v2198, %v2321
        %v2323 = vlaneseq
        %v2324 = vshrl.u32 %v2323, 7
        %v2325 = vsub.s32 3, %v2324
        %v2326 = vrot.slane %v2198, %v2325
        %v2359 = vadd.f32 %v2016, %v2202
        %v2360 = vadd.f32 %v2018, %v2206
        %v2361 = vadd.f32 %v2089, %v2210
        %v2362 = vadd.f32 %v2091, %v2214
        %v2363 = vadd.f32 %v2020, %v2218
        %v2364 = vadd.f32 %v2022, %v2222
        %v2365 = vadd.f32 %v2093, %v2226
        %v2366 = vadd.f32 %v2095, %v2230
        %v2367 = vadd.f32 %v2026, %v2234
        %v2368 = vadd.f32 %v2028, %v2238
        %v2369 = vadd.f32 %v2099, %v2242
        %v2370 = vadd.f32 %v2101, %v2246
        %v2371 = vadd.f32 %v2030, %v2250
        %v2372 = vadd.f32 %v2032, %v2254
        %v2373 = vadd.f32 %v2103, %v2258
        %v2374 = vadd.f32 %v2105, %v2262
        %v2375 = vadd.f32 %v2036, %v2266
        %v2376 = vadd.f32 %v2038, %v2270
        %v2377 = vadd.f32 %v2109, %v2274
        %v2378 = vadd.f32 %v2111, %v2278
        %v2379 = vadd.f32 %v2040, %v2282
        %v2380 = vadd.f32 %v2042, %v2286
        %v2381 = vadd.f32 %v2113, %v2290
        %v2382 = vadd.f32 %v2115, %v2294
        %v2383 = vadd.f32 %v2046, %v2298
        %v2384 = vadd.f32 %v2048, %v2302
        %v2385 = vadd.f32 %v2119, %v2306
        %v2386 = vadd.f32 %v2121, %v2310
        %v2387 = vadd.f32 %v2050, %v2314
        %v2388 = vadd.f32 %v2052, %v2318
        %v2389 = vadd.f32 %v2123, %v2322
        %v2390 = vadd.f32 %v2125, %v2326
        %v2391 = vmax.f32 %v2359, 0.0
        %v2392 = vmax.f32 %v2360, 0.0
        %v2393 = vmax.f32 %v2361, 0.0
        %v2394 = vmax.f32 %v2362, 0.0
        %v2395 = vmax.f32 %v2363, 0.0
        %v2396 = vmax.f32 %v2364, 0.0
        %v2397 = vmax.f32 %v2365, 0.0
        %v2398 = vmax.f32 %v2366, 0.0
        %v2399 = vmax.f32 %v2367, 0.0
        %v2400 = vmax.f32 %v2368, 0.0
        %v2401 = vmax.f32 %v2369, 0.0
        %v2402 = vmax.f32 %v2370, 0.0
        %v2403 = vmax.f32 %v2371, 0.0
        %v2404 = vmax.f32 %v2372, 0.0
        %v2405 = vmax.f32 %v2373, 0.0
        %v2406 = vmax.f32 %v2374, 0.0
        %v2407 = vmax.f32 %v2375, 0.0
        %v2408 = vmax.f32 %v2376, 0.0
        %v2409 = vmax.f32 %v2377, 0.0
        %v2410 = vmax.f32 %v2378, 0.0
        %v2411 = vmax.f32 %v2379, 0.0
        %v2412 = vmax.f32 %v2380, 0.0
        %v2413 = vmax.f32 %v2381, 0.0
        %v2414 = vmax.f32 %v2382, 0.0
        %v2415 = vmax.f32 %v2383, 0.0
        %v2416 = vmax.f32 %v2384, 0.0
        %v2417 = vmax.f32 %v2385, 0.0
        %v2418 = vmax.f32 %v2386, 0.0
        %v2419 = vmax.f32 %v2387, 0.0
        %v2420 = vmax.f32 %v2388, 0.0
        %v2421 = vmax.f32 %v2389, 0.0
        %v2422 = vmax.f32 %v2390, 0.0
        %v2423 = vpack.c.bf16 %v2395, %v2391
        %v2424 = vpack.c.bf16 %v2396, %v2392
        %v2425 = vpack.c.bf16 %v2397, %v2393
        %v2426 = vpack.c.bf16 %v2398, %v2394
        %v2427 = vpack.c.bf16 %v2403, %v2399
        %v2428 = vpack.c.bf16 %v2404, %v2400
        %v2429 = vpack.c.bf16 %v2405, %v2401
        %v2430 = vpack.c.bf16 %v2406, %v2402
        %v2431 = vpack.c.bf16 %v2411, %v2407
        %v2432 = vpack.c.bf16 %v2412, %v2408
        %v2433 = vpack.c.bf16 %v2413, %v2409
        %v2434 = vpack.c.bf16 %v2414, %v2410
        %v2435 = vpack.c.bf16 %v2419, %v2415
        %v2436 = vpack.c.bf16 %v2420, %v2416
        %v2437 = vpack.c.bf16 %v2421, %v2417
        %v2438 = vpack.c.bf16 %v2422, %v2418
        %v2439 = vld [vmem:[#allocation7] sm:$0xf]
        %v2440 = vld [vmem:[#allocation7 + $0x4] sm:$0xf]
        %v2441 = vld [vmem:[#allocation7 + $0x8] sm:$0xf]
        %v2442 = vld [vmem:[#allocation7 + $0xc] sm:$0xf]
        %v2443 = vld [vmem:[#allocation7 + $0x10] sm:$0xf]
        %v2444 = vld [vmem:[#allocation7 + $0x14] sm:$0xf]
        %v2445 = vld [vmem:[#allocation7 + $0x18] sm:$0xf]
        %v2446 = vld [vmem:[#allocation7 + $0x1c] sm:$0xf]
        %v2447 = vld [vmem:[#allocation7 + $0x20] sm:$0xf]
        %v2448 = vld [vmem:[#allocation7 + $0x24] sm:$0xf]
        %v2449 = vld [vmem:[#allocation7 + $0x28] sm:$0xf]
        %v2450 = vld [vmem:[#allocation7 + $0x2c] sm:$0xf]
        %v2451 = vld [vmem:[#allocation7 + $0x30] sm:$0xf]
        %v2452 = vld [vmem:[#allocation7 + $0x34] sm:$0xf]
        %v2453 = vld [vmem:[#allocation7 + $0x38] sm:$0xf]
        %v2454 = vld [vmem:[#allocation7 + $0x3c] sm:$0xf]
        %v2455 = vld [vmem:[#allocation7 + $0x40] sm:$0xf]
        %v2456 = vld [vmem:[#allocation7 + $0x44] sm:$0xf]
        %v2457 = vld [vmem:[#allocation7 + $0x48] sm:$0xf]
        %v2458 = vld [vmem:[#allocation7 + $0x4c] sm:$0xf]
        %v2459 = vld [vmem:[#allocation7 + $0x50] sm:$0xf]
        %v2460 = vld [vmem:[#allocation7 + $0x54] sm:$0xf]
        %v2461 = vld [vmem:[#allocation7 + $0x58] sm:$0xf]
        %v2462 = vld [vmem:[#allocation7 + $0x5c] sm:$0xf]
        %v2463 = vld [vmem:[#allocation7 + $0x60] sm:$0xf]
        %v2464 = vld [vmem:[#allocation7 + $0x64] sm:$0xf]
        %v2465 = vld [vmem:[#allocation7 + $0x68] sm:$0xf]
        %v2466 = vld [vmem:[#allocation7 + $0x6c] sm:$0xf]
        %v2467 = vld [vmem:[#allocation7 + $0x70] sm:$0xf]
        %v2468 = vld [vmem:[#allocation7 + $0x74] sm:$0xf]
        %v2469 = vld [vmem:[#allocation7 + $0x78] sm:$0xf]
        %v2470 = vld [vmem:[#allocation7 + $0x7c] sm:$0xf]
        %v2471 = vld [vmem:[#allocation7 + $0x80] sm:$0xf]
        %v2472 = vld [vmem:[#allocation7 + $0x84] sm:$0xf]
        %v2473 = vld [vmem:[#allocation7 + $0x88] sm:$0xf]
        %v2474 = vld [vmem:[#allocation7 + $0x8c] sm:$0xf]
        %v2475 = vld [vmem:[#allocation7 + $0x90] sm:$0xf]
        %v2476 = vld [vmem:[#allocation7 + $0x94] sm:$0xf]
        %v2477 = vld [vmem:[#allocation7 + $0x98] sm:$0xf]
        %v2478 = vld [vmem:[#allocation7 + $0x9c] sm:$0xf]
        %v2479 = vld [vmem:[#allocation7 + $0xa0] sm:$0xf]
        %v2480 = vld [vmem:[#allocation7 + $0xa4] sm:$0xf]
        %v2481 = vld [vmem:[#allocation7 + $0xa8] sm:$0xf]
        %v2482 = vld [vmem:[#allocation7 + $0xac] sm:$0xf]
        %v2483 = vld [vmem:[#allocation7 + $0xb0] sm:$0xf]
        %v2484 = vld [vmem:[#allocation7 + $0xb4] sm:$0xf]
        %v2485 = vld [vmem:[#allocation7 + $0xb8] sm:$0xf]
        %v2486 = vld [vmem:[#allocation7 + $0xbc] sm:$0xf]
        %v2487 = vld [vmem:[#allocation7 + $0xc0] sm:$0xf]
        %v2488 = vld [vmem:[#allocation7 + $0xc4] sm:$0xf]
        %v2489 = vld [vmem:[#allocation7 + $0xc8] sm:$0xf]
        %v2490 = vld [vmem:[#allocation7 + $0xcc] sm:$0xf]
        %v2491 = vld [vmem:[#allocation7 + $0xd0] sm:$0xf]
        %v2492 = vld [vmem:[#allocation7 + $0xd4] sm:$0xf]
        %v2493 = vld [vmem:[#allocation7 + $0xd8] sm:$0xf]
        %v2494 = vld [vmem:[#allocation7 + $0xdc] sm:$0xf]
        %v2495 = vld [vmem:[#allocation7 + $0xe0] sm:$0xf]
        %v2496 = vld [vmem:[#allocation7 + $0xe4] sm:$0xf]
        %v2497 = vld [vmem:[#allocation7 + $0xe8] sm:$0xf]
        %v2498 = vld [vmem:[#allocation7 + $0xec] sm:$0xf]
        %v2499 = vld [vmem:[#allocation7 + $0xf0] sm:$0xf]
        %v2500 = vld [vmem:[#allocation7 + $0xf4] sm:$0xf]
        %v2501 = vld [vmem:[#allocation7 + $0xf8] sm:$0xf]
        %v2502 = vld [vmem:[#allocation7 + $0xfc] sm:$0xf]
        %v2503 = vld [vmem:[%s10] sm:$0x1]
        %v2505 = vlaneseq
        %v2506 = vshrl.u32 %v2505, 7
        %v2507 = vsub.s32 0, %v2506
        %v2508 = vrot.slane %v2503, %v2507
        %v2574 = vunpack.c.l.b16 %v2439
        %v2575 = vunpack.c.l.b16 %v2440
        %v2576 = vunpack.c.l.b16 %v2441
        %v2577 = vunpack.c.l.b16 %v2442
        %v2578 = vunpack.c.l.b16 %v2443
        %v2579 = vunpack.c.l.b16 %v2444
        %v2580 = vunpack.c.l.b16 %v2445
        %v2581 = vunpack.c.l.b16 %v2446
        %v2582 = vunpack.c.l.b16 %v2447
        %v2583 = vunpack.c.l.b16 %v2448
        %v2584 = vunpack.c.l.b16 %v2449
        %v2585 = vunpack.c.l.b16 %v2450
        %v2586 = vunpack.c.l.b16 %v2451
        %v2587 = vunpack.c.l.b16 %v2452
        %v2588 = vunpack.c.l.b16 %v2453
        %v2589 = vunpack.c.l.b16 %v2454
        %v2590 = vunpack.c.l.b16 %v2455
        %v2591 = vunpack.c.l.b16 %v2456
        %v2592 = vunpack.c.l.b16 %v2457
        %v2593 = vunpack.c.l.b16 %v2458
        %v2594 = vunpack.c.l.b16 %v2459
        %v2595 = vunpack.c.l.b16 %v2460
        %v2596 = vunpack.c.l.b16 %v2461
        %v2597 = vunpack.c.l.b16 %v2462
        %v2598 = vunpack.c.l.b16 %v2463
        %v2599 = vunpack.c.l.b16 %v2464
        %v2600 = vunpack.c.l.b16 %v2465
        %v2601 = vunpack.c.l.b16 %v2466
        %v2602 = vunpack.c.l.b16 %v2467
        %v2603 = vunpack.c.l.b16 %v2468
        %v2604 = vunpack.c.l.b16 %v2469
        %v2605 = vunpack.c.l.b16 %v2470
        %v2606 = vunpack.c.l.b16 %v2471
        %v2607 = vunpack.c.l.b16 %v2472
        %v2608 = vunpack.c.l.b16 %v2473
        %v2609 = vunpack.c.l.b16 %v2474
        %v2610 = vunpack.c.l.b16 %v2475
        %v2611 = vunpack.c.l.b16 %v2476
        %v2612 = vunpack.c.l.b16 %v2477
        %v2613 = vunpack.c.l.b16 %v2478
        %v2614 = vunpack.c.l.b16 %v2479
        %v2615 = vunpack.c.l.b16 %v2480
        %v2616 = vunpack.c.l.b16 %v2481
        %v2617 = vunpack.c.l.b16 %v2482
        %v2618 = vunpack.c.l.b16 %v2483
        %v2619 = vunpack.c.l.b16 %v2484
        %v2620 = vunpack.c.l.b16 %v2485
        %v2621 = vunpack.c.l.b16 %v2486
        %v2622 = vunpack.c.l.b16 %v2487
        %v2623 = vunpack.c.l.b16 %v2488
        %v2624 = vunpack.c.l.b16 %v2489
        %v2625 = vunpack.c.l.b16 %v2490
        %v2626 = vunpack.c.l.b16 %v2491
        %v2627 = vunpack.c.l.b16 %v2492
        %v2628 = vunpack.c.l.b16 %v2493
        %v2629 = vunpack.c.l.b16 %v2494
        %v2630 = vunpack.c.l.b16 %v2495
        %v2631 = vunpack.c.l.b16 %v2496
        %v2632 = vunpack.c.l.b16 %v2497
        %v2633 = vunpack.c.l.b16 %v2498
        %v2634 = vunpack.c.l.b16 %v2499
        %v2635 = vunpack.c.l.b16 %v2500
        %v2636 = vunpack.c.l.b16 %v2501
        %v2637 = vunpack.c.l.b16 %v2502
        %v2638 = vpack.c.b16 %v2575, %v2574
        %v2639 = vpack.c.b16 %v2577, %v2576
        %v2640 = vpack.c.b16 %v2579, %v2578
        %v2641 = vpack.c.b16 %v2581, %v2580
        %v2642 = vpack.c.b16 %v2583, %v2582
        %v2643 = vpack.c.b16 %v2585, %v2584
        %v2644 = vpack.c.b16 %v2587, %v2586
        %v2645 = vpack.c.b16 %v2589, %v2588
        %v2646 = vpack.c.b16 %v2591, %v2590
        %v2647 = vpack.c.b16 %v2593, %v2592
        %v2648 = vpack.c.b16 %v2595, %v2594
        %v2649 = vpack.c.b16 %v2597, %v2596
        %v2650 = vpack.c.b16 %v2599, %v2598
        %v2651 = vpack.c.b16 %v2601, %v2600
        %v2652 = vpack.c.b16 %v2603, %v2602
        %v2653 = vpack.c.b16 %v2605, %v2604
        %v2654 = vpack.c.b16 %v2607, %v2606
        %v2655 = vpack.c.b16 %v2609, %v2608
        %v2656 = vpack.c.b16 %v2611, %v2610
        %v2657 = vpack.c.b16 %v2613, %v2612
        %v2658 = vpack.c.b16 %v2615, %v2614
        %v2659 = vpack.c.b16 %v2617, %v2616
        %v2660 = vpack.c.b16 %v2619, %v2618
        %v2661 = vpack.c.b16 %v2621, %v2620
        %v2662 = vpack.c.b16 %v2623, %v2622
        %v2663 = vpack.c.b16 %v2625, %v2624
        %v2664 = vpack.c.b16 %v2627, %v2626
        %v2665 = vpack.c.b16 %v2629, %v2628
        %v2666 = vpack.c.b16 %v2631, %v2630
        %v2667 = vpack.c.b16 %v2633, %v2632
        %v2668 = vpack.c.b16 %v2635, %v2634
        %v2669 = vpack.c.b16 %v2637, %v2636
        %2702 = vmatprep.subr.bf16.mxu0 0
        %2703 = vmatpush1.bf16.msra.mxu0 %v2638
        %2704 = vmatprep.subr.bf16.mxu0 0
        %2705 = vmatpush1.bf16.msra.mxu0 %v2639
        %2706 = vmatprep.subr.bf16.mxu0 0
        %2707 = vmatpush1.bf16.msra.mxu0 %v2640
        %2708 = vmatprep.subr.bf16.mxu0 0
        %2709 = vmatpush1.bf16.msra.mxu0 %v2641
        %2710 = vmatprep.subr.bf16.mxu0 0
        %2711 = vmatpush1.bf16.msra.mxu0 %v2642
        %2712 = vmatprep.subr.bf16.mxu0 0
        %2713 = vmatpush1.bf16.msra.mxu0 %v2643
        %2714 = vmatprep.subr.bf16.mxu0 0
        %2715 = vmatpush1.bf16.msra.mxu0 %v2644
        %2716 = vmatprep.subr.bf16.mxu0 0
        %2717 = vmatpush1.bf16.msra.mxu0 %v2645
        %2718 = vmatprep.subr.bf16.mxu0 0
        %2719 = vmatpush1.bf16.msra.mxu0 %v2646
        %2720 = vmatprep.subr.bf16.mxu0 0
        %2721 = vmatpush1.bf16.msra.mxu0 %v2647
        %2722 = vmatprep.subr.bf16.mxu0 0
        %2723 = vmatpush1.bf16.msra.mxu0 %v2648
        %2724 = vmatprep.subr.bf16.mxu0 0
        %2725 = vmatpush1.bf16.msra.mxu0 %v2649
        %2726 = vmatprep.subr.bf16.mxu0 0
        %2727 = vmatpush1.bf16.msra.mxu0 %v2650
        %2728 = vmatprep.subr.bf16.mxu0 0
        %2729 = vmatpush1.bf16.msra.mxu0 %v2651
        %2730 = vmatprep.subr.bf16.mxu0 0
        %2731 = vmatpush1.bf16.msra.mxu0 %v2652
        %2732 = vmatprep.subr.bf16.mxu0 0
        %2733 = vmatpush1.bf16.msra.mxu0 %v2653
        %2734 = vmatprep.mubr.bf16.mxu0 %v2424
        %2735 = vmatmul.mubr.bf16.gmra.mrb[0].mxu0 %v2423
        %v2736 = vpop.f32.mrb[0].mxu0
        %v2737 = vadd.f32 %v2508, %v2736
        %v2738 = vpop.f32.mrb[0].mxu0
        %v2739 = vpop.f32.mrb[0].mxu0
        %v2740 = vadd.f32 %v2508, %v2739
        %v2741 = vpop.f32.mrb[0].mxu0
        %2742 = vmatprep.mubr.bf16.mxu0 %v2428
        %2743 = vmatmul.mubr.bf16.gmra.mrb[0].mxu0 %v2427
        %v2744 = vpop.f32.mrb[0].mxu0
        %v2745 = vadd.f32 %v2508, %v2744
        %v2746 = vpop.f32.mrb[0].mxu0
        %v2747 = vpop.f32.mrb[0].mxu0
        %v2748 = vadd.f32 %v2508, %v2747
        %v2749 = vpop.f32.mrb[0].mxu0
        %2750 = vmatprep.mubr.bf16.mxu0 %v2432
        %2751 = vmatmul.mubr.bf16.gmra.mrb[0].mxu0 %v2431
        %v2752 = vpop.f32.mrb[0].mxu0
        %v2753 = vadd.f32 %v2508, %v2752
        %v2754 = vpop.f32.mrb[0].mxu0
        %v2755 = vpop.f32.mrb[0].mxu0
        %v2756 = vadd.f32 %v2508, %v2755
        %v2757 = vpop.f32.mrb[0].mxu0
        %2758 = vmatprep.mubr.bf16.mxu0 %v2436
        %2759 = vmatmul.mubr.bf16.gmra.mrb[0].mxu0 %v2435
        %v2760 = vpop.f32.mrb[0].mxu0
        %v2761 = vadd.f32 %v2508, %v2760
        %v2762 = vpop.f32.mrb[0].mxu0
        %v2763 = vpop.f32.mrb[0].mxu0
        %v2764 = vadd.f32 %v2508, %v2763
        %v2765 = vpop.f32.mrb[0].mxu0
        %2766 = vdwg.mxu0
        %2767 = vmatprep.subr.bf16.mxu0 0
        %2768 = vmatpush1.bf16.msra.mxu0 %v2654
        %2769 = vmatprep.subr.bf16.mxu0 0
        %2770 = vmatpush1.bf16.msra.mxu0 %v2655
        %2771 = vmatprep.subr.bf16.mxu0 0
        %2772 = vmatpush1.bf16.msra.mxu0 %v2656
        %2773 = vmatprep.subr.bf16.mxu0 0
        %2774 = vmatpush1.bf16.msra.mxu0 %v2657
        %2775 = vmatprep.subr.bf16.mxu0 0
        %2776 = vmatpush1.bf16.msra.mxu0 %v2658
        %2777 = vmatprep.subr.bf16.mxu0 0
        %2778 = vmatpush1.bf16.msra.mxu0 %v2659
        %2779 = vmatprep.subr.bf16.mxu0 0
        %2780 = vmatpush1.bf16.msra.mxu0 %v2660
        %2781 = vmatprep.subr.bf16.mxu0 0
        %2782 = vmatpush1.bf16.msra.mxu0 %v2661
        %2783 = vmatprep.subr.bf16.mxu0 0
        %2784 = vmatpush1.bf16.msra.mxu0 %v2662
        %2785 = vmatprep.subr.bf16.mxu0 0
        %2786 = vmatpush1.bf16.msra.mxu0 %v2663
        %2787 = vmatprep.subr.bf16.mxu0 0
        %2788 = vmatpush1.bf16.msra.mxu0 %v2664
        %2789 = vmatprep.subr.bf16.mxu0 0
        %2790 = vmatpush1.bf16.msra.mxu0 %v2665
        %2791 = vmatprep.subr.bf16.mxu0 0
        %2792 = vmatpush1.bf16.msra.mxu0 %v2666
        %2793 = vmatprep.subr.bf16.mxu0 0
        %2794 = vmatpush1.bf16.msra.mxu0 %v2667
        %2795 = vmatprep.subr.bf16.mxu0 0
        %2796 = vmatpush1.bf16.msra.mxu0 %v2668
        %2797 = vmatprep.subr.bf16.mxu0 0
        %2798 = vmatpush1.bf16.msra.mxu0 %v2669
        %2799 = vmatprep.mubr.bf16.mxu0 %v2426
        %2800 = vmatmul.mubr.bf16.gmra.mrb[0].mxu0 %v2425
        %v2801 = vpop.f32.mrb[0].mxu0
        %v2802 = vadd.f32 %v2737, %v2801
        %v2803 = vpop.f32.mrb[0].mxu0
        %v2804 = vpop.f32.mrb[0].mxu0
        %v2805 = vadd.f32 %v2740, %v2804
        %v2806 = vpop.f32.mrb[0].mxu0
        %2807 = vmatprep.mubr.bf16.mxu0 %v2430
        %2808 = vmatmul.mubr.bf16.gmra.mrb[0].mxu0 %v2429
        %v2809 = vpop.f32.mrb[0].mxu0
        %v2810 = vadd.f32 %v2745, %v2809
        %v2811 = vpop.f32.mrb[0].mxu0
        %v2812 = vpop.f32.mrb[0].mxu0
        %v2813 = vadd.f32 %v2748, %v2812
        %v2814 = vpop.f32.mrb[0].mxu0
        %2815 = vmatprep.mubr.bf16.mxu0 %v2434
        %2816 = vmatmul.mubr.bf16.gmra.mrb[0].mxu0 %v2433
        %v2817 = vpop.f32.mrb[0].mxu0
        %v2818 = vadd.f32 %v2753, %v2817
        %v2819 = vpop.f32.mrb[0].mxu0
        %v2820 = vpop.f32.mrb[0].mxu0
        %v2821 = vadd.f32 %v2756, %v2820
        %v2822 = vpop.f32.mrb[0].mxu0
        %2823 = vmatprep.mubr.bf16.mxu0 %v2438
        %2824 = vmatmul.mubr.bf16.gmra.mrb[0].mxu0 %v2437
        %v2825 = vpop.f32.mrb[0].mxu0
        %v2826 = vadd.f32 %v2761, %v2825
        %v2827 = vpop.f32.mrb[0].mxu0
        %v2828 = vpop.f32.mrb[0].mxu0
        %v2829 = vadd.f32 %v2764, %v2828
        %v2830 = vpop.f32.mrb[0].mxu0
        %2831 = vdwg.mxu0
        %v2832 = vrot.slane %v2802, 4
        %v2833 = vmax.f32 %v2802, %v2832
        %v2834 = vrot.slane %v2833, 2
        %v2835 = vmax.f32 %v2833, %v2834
        %v2836 = vrot.slane %v2835, 1
        %v2837 = vmax.f32 %v2835, %v2836
        %v2838 = vrot.slane %v2805, 4
        %v2839 = vmax.f32 %v2805, %v2838
        %v2840 = vrot.slane %v2839, 2
        %v2841 = vmax.f32 %v2839, %v2840
        %v2842 = vrot.slane %v2841, 1
        %v2843 = vmax.f32 %v2841, %v2842
        %v2844 = vrot.slane %v2810, 4
        %v2845 = vmax.f32 %v2810, %v2844
        %v2846 = vrot.slane %v2845, 2
        %v2847 = vmax.f32 %v2845, %v2846
        %v2848 = vrot.slane %v2847, 1
        %v2849 = vmax.f32 %v2847, %v2848
        %v2850 = vrot.slane %v2813, 4
        %v2851 = vmax.f32 %v2813, %v2850
        %v2852 = vrot.slane %v2851, 2
        %v2853 = vmax.f32 %v2851, %v2852
        %v2854 = vrot.slane %v2853, 1
        %v2855 = vmax.f32 %v2853, %v2854
        %v2856 = vrot.slane %v2818, 4
        %v2857 = vmax.f32 %v2818, %v2856
        %v2858 = vrot.slane %v2857, 2
        %v2859 = vmax.f32 %v2857, %v2858
        %v2860 = vrot.slane %v2859, 1
        %v2861 = vmax.f32 %v2859, %v2860
        %v2862 = vrot.slane %v2821, 4
        %v2863 = vmax.f32 %v2821, %v2862
        %v2864 = vrot.slane %v2863, 2
        %v2865 = vmax.f32 %v2863, %v2864
        %v2866 = vrot.slane %v2865, 1
        %v2867 = vmax.f32 %v2865, %v2866
        %v2868 = vrot.slane %v2826, 4
        %v2869 = vmax.f32 %v2826, %v2868
        %v2870 = vrot.slane %v2869, 2
        %v2871 = vmax.f32 %v2869, %v2870
        %v2872 = vrot.slane %v2871, 1
        %v2873 = vmax.f32 %v2871, %v2872
        %v2874 = vrot.slane %v2829, 4
        %v2875 = vmax.f32 %v2829, %v2874
        %v2876 = vrot.slane %v2875, 2
        %v2877 = vmax.f32 %v2875, %v2876
        %v2878 = vrot.slane %v2877, 1
        %v2879 = vmax.f32 %v2877, %v2878
        %v2888 = vsel %vm1140, %v2843, %v2837
        %v2889 = vsel %vm1142, %v2849, %v2888
        %v2890 = vsel %vm1144, %v2855, %v2889
        %v2891 = vsel %vm1146, %v2861, %v2890
        %v2892 = vsel %vm1148, %v2867, %v2891
        %v2893 = vsel %vm1150, %v2873, %v2892
        %v2894 = vsel %vm1152, %v2879, %v2893
        %2896 = vst [vmem:[%s437] sm:$0xff] %v2894
        %s2897 = sand.u32 %s276, 1
        %s2898 = scalar_lea.sflag [#allocation4], %s2897
        %s2899 = sand.u32 %s276, 1
        %s2900 = smul.addr %s2899, 8
        %s2901 = scalar_lea.vmem [#allocation8], %s2900
        // Predicated region
        $region77: #{tpu_custom_call.1} parent=63 // pred_check
          %p2902 = pneg %p286
        $region78: #{tpu_custom_call.1} parent=63 // pred_check_branch
          %2904 = sbr.rel (%p2902) target = $region80
        $region79: #{tpu_custom_call.1} parent=63 // pred_region
          %s2906 = ssub.s32 128, 128
          %2907 = vsyncadd %s2898, %s2906
          %s2908 = smul.addr %s27, 128
          %s2909 = scalar_lea.hbm %s11, %s2908
          %s2911 = sshll.u32 %s2901, 4
          %s2912 = int_to_ptr.vmem [resolvable:$true] %s2911
          %2914 = dma.vmem_to_hbm [thread:$0]  %s2912, 128, %s2909, %s2898
        $region80: #{tpu_custom_call.1} parent=63 // pred_fallthru
          _
      $region64: #{tpu_custom_call.1} parent=5 // pred_fallthru
        _
      %p2915 = scmp.le.s32.totalorder 2, %s22
      // Predicated region
      $region81: #{tpu_custom_call.1} parent=5 // pred_check
        %p2916 = pneg %p2915
      $region82: #{tpu_custom_call.1} parent=5 // pred_check_branch
        %2918 = sbr.rel (%p2916) target = $region84
      $region83: #{tpu_custom_call.1} parent=5 // pred_region
        %s2919 = ssub.s32 %s22, 2
        // Predicated region
        $region85: #{tpu_custom_call.1} parent=83 // pred_check
          %p2920 = pneg %p292
        $region86: #{tpu_custom_call.1} parent=83 // pred_check_branch
          %2922 = sbr.rel (%p2920) target = $region88
        $region87: #{tpu_custom_call.1} parent=83 // pred_region
          %s2923 = sand.u32 %s277, 1
          %s2924 = scalar_lea.sflag [#allocation4], %s2923
          %s2925 = sand.u32 %s277, 1
          %s2926 = smul.addr %s2925, 8
          %s2927 = scalar_lea.vmem [#allocation8], %s2926
          %2928 = dma.done %s2924, 128
        $region88: #{tpu_custom_call.1} parent=83 // pred_fallthru
          _
      $region84: #{tpu_custom_call.1} parent=5 // pred_fallthru
        _
    $region6: #{tpu_custom_call.1} parent=1 // loop_footer
      %s26 = sadd.s32 1, %s22
    $region7: #{tpu_custom_call.1} parent=1 // loop_footer_branch
      %21 = sbr.rel target = $region3
    $region8: #{tpu_custom_call.1} parent=1 // loop_exit
      _
    %2929 = vsyncpa [#allocation3], 1
    %s2930 = scalar_lea.sflag [#allocation3], 1
    %2931 = vsyncpa %s2930, 1
    %2932 = vsyncpa [#allocation6], 1
    %2933 = vsyncpa [#allocation4], 1
    %s2934 = scalar_lea.sflag [#allocation4], 1
    %2935 = vsyncpa %s2934, 1

</llo_original>
